<compile_context>
chip_gen: v5e
topology: v5e:2x2
jax: 0.10.0
libtpu: 0.0.40
codegen_flags: <defaults>
</compile_context>

<pallas_src>
import functools

import jax
import jax.numpy as jnp
from jax.experimental import pallas as pl
from jax.experimental.pallas import tpu as pltpu

CP = 128  # lane-dense channel padding used for all activations / weights


# ----------------------------- Pallas kernels ------------------------------

def _mm_kernel(x_ref, w_ref, b_ref, o_ref, *, relu, gap):
    """Per-image conv-as-matmul: y = act(x @ w + b); optional fused global-avg-pool."""
    y = jnp.dot(x_ref[0], w_ref[...], preferred_element_type=jnp.float32)
    y = y + b_ref[...]
    if relu:
        y = jnp.maximum(y, 0.0)
    if gap:
        o_ref[...] = jnp.mean(y, axis=0)[None, None, :].astype(o_ref.dtype)
    else:
        o_ref[...] = y[None, :, :].astype(o_ref.dtype)


def _mm_res_kernel(x_ref, w_ref, b_ref, r_ref, o_ref, *, relu, gap):
    """Same as _mm_kernel but with a fused residual add (no materialized zeros)."""
    y = jnp.dot(x_ref[0], w_ref[...], preferred_element_type=jnp.float32)
    y = y + b_ref[...] + r_ref[0].astype(jnp.float32)
    if relu:
        y = jnp.maximum(y, 0.0)
    if gap:
        o_ref[...] = jnp.mean(y, axis=0)[None, None, :].astype(o_ref.dtype)
    else:
        o_ref[...] = y[None, :, :].astype(o_ref.dtype)


def _conv3x3_kernel(x_ref, w_ref, b_ref, o_ref, *, relu):
    """3x3 / stride-1 conv with in-kernel im2col: 9 shifted matmuls accumulated in f32."""
    _, hp, wp, c = x_ref.shape
    ho, wo = hp - 2, wp - 2
    cout = w_ref.shape[-1]
    x = x_ref[0]                                            # (hp, wp, c) bf16 in VMEM
    acc = jnp.zeros((ho * wo, cout), jnp.float32)
    for i in range(3):
        for j in range(3):
            tap = x[i:i + ho, j:j + wo, :].reshape(ho * wo, c)
            acc = acc + jnp.dot(tap, w_ref[i * 3 + j],
                                preferred_element_type=jnp.float32)
    acc = acc + b_ref[...]
    if relu:
        acc = jnp.maximum(acc, 0.0)
    o_ref[...] = acc[None, :, :].astype(o_ref.dtype)


def _head_kernel(f_ref, w_ref, b_ref, o_ref, *, norm):
    """x.mean(1) -> Linear -> optional F.normalize(p=2, dim=1)."""
    m = jnp.mean(f_ref[...], axis=1)                                    # (B, CP)
    y = jnp.dot(m, w_ref[...], preferred_element_type=jnp.float32) + b_ref[...]
    if norm:
        ssq = jnp.sum(y * y, axis=1, keepdims=True)
        # sqrt(max(ssq, eps^2)) == max(||y||, eps): matches torch F.normalize(eps=1e-12)
        y = y * jax.lax.rsqrt(jnp.maximum(ssq, 1e-24))
    o_ref[...] = y.astype(o_ref.dtype)


# ------------------------------- wrappers -----------------------------------

def pallas_mm(x, w, b, residual=None, relu=True, gap=False):
    """x: (M, S, K) bf16; w: (K, CP) bf16; b: (1, CP) f32; residual: (M, S, CP) bf16."""
    M, S, K = x.shape
    CPo = w.shape[1]
    out_S = 1 if gap else S
    out_dtype = jnp.float32 if gap else jnp.bfloat16
    in_specs = [
        pl.BlockSpec((1, S, K), lambda m: (m, 0, 0)),
        pl.BlockSpec((K, CPo), lambda m: (0, 0)),
        pl.BlockSpec((1, CPo), lambda m: (0, 0)),
    ]
    args = [x, w, b]
    if residual is None:
        kernel = functools.partial(_mm_kernel, relu=relu, gap=gap)
    else:
        kernel = functools.partial(_mm_res_kernel, relu=relu, gap=gap)
        in_specs.append(pl.BlockSpec((1, S, CPo), lambda m: (m, 0, 0)))
        args.append(residual)
    return pl.pallas_call(
        kernel,
        out_shape=jax.ShapeDtypeStruct((M, out_S, CPo), out_dtype),
        grid=(M,),
        in_specs=in_specs,
        out_specs=pl.BlockSpec((1, out_S, CPo), lambda m: (m, 0, 0)),
        compiler_params=pltpu.CompilerParams(dimension_semantics=("parallel",)),
    )(*args)


def pallas_conv3x3(x_mhwc, w_taps, b, relu=True):
    """3x3 / stride-1 / pad-1 conv; halo added outside, im2col done inside the kernel."""
    M, H, W, C = x_mhwc.shape
    xp = jnp.pad(x_mhwc, ((0, 0), (1, 1), (1, 1), (0, 0)))       # tiny spatial halo copy
    Hp, Wp = H + 2, W + 2
    CPo = w_taps.shape[-1]
    return pl.pallas_call(
        functools.partial(_conv3x3_kernel, relu=relu),
        out_shape=jax.ShapeDtypeStruct((M, H * W, CPo), jnp.bfloat16),
        grid=(M,),
        in_specs=[
            pl.BlockSpec((1, Hp, Wp, C), lambda m: (m, 0, 0, 0)),
            pl.BlockSpec((9, C, CPo), lambda m: (0, 0, 0)),
            pl.BlockSpec((1, CPo), lambda m: (0, 0)),
        ],
        out_specs=pl.BlockSpec((1, H * W, CPo), lambda m: (m, 0, 0)),
        compiler_params=pltpu.CompilerParams(dimension_semantics=("parallel",)),
    )(xp, w_taps, b)


def pallas_head(feats, w, b, norm):
    B = feats.shape[0]
    CPo = w.shape[1]
    return pl.pallas_call(
        functools.partial(_head_kernel, norm=norm),
        out_shape=jax.ShapeDtypeStruct((B, CPo), jnp.float32),
    )(feats, w, b)


def _im2col(x_mhwc, kh, kw, stride, pad):
    """JAX-side im2col; only used for the 3-channel stem (27-wide patches, negligible)."""
    if pad:
        x_mhwc = jnp.pad(x_mhwc, ((0, 0), (pad, pad), (pad, pad), (0, 0)))
    M, H, W, C = x_mhwc.shape
    Ho = (H - kh) // stride + 1
    Wo = (W - kw) // stride + 1
    cols = []
    for i in range(kh):
        for j in range(kw):
            cols.append(x_mhwc[:, i:i + (Ho - 1) * stride + 1:stride,
                               j:j + (Wo - 1) * stride + 1:stride, :])
    patches = jnp.concatenate(cols, axis=-1)          # (M, Ho, Wo, kh*kw*C), (i,j,c) order
    return patches.reshape(M, Ho * Wo, kh * kw * C), (Ho, Wo)


# ----------------------------- parameters -----------------------------------

def init_params(key, config):
    lin = config['linear']
    F_in, F_out = lin['in_size'], lin['out_size']
    C_stem, C_mid = F_in, max(F_in // 2, 1)
    ks = jax.random.split(key, 10)

    def conv_w(k, kh, kw, ci, co):
        fan_in = kh * kw * ci
        return jax.random.normal(k, (kh, kw, ci, co), jnp.float32) * (2.0 / fan_in) ** 0.5

    def bn(k, c):  # folded eval-mode BN: per-channel scale / bias
        s = 0.5 + jax.random.uniform(k, (c,), jnp.float32)
        b = 0.1 * jax.random.normal(jax.random.fold_in(k, 1), (c,), jnp.float32)
        return s, b

    def fold_pad(w_hwio, scale, bias, pad_cin):
        # fold BN scale into the conv weight; zero-pad channels to CP (lane dense)
        kh, kw, ci, co = w_hwio.shape
        w = w_hwio * scale.reshape(1, 1, 1, co)
        ci_t = CP if pad_cin else ci
        w = jnp.pad(w, ((0, 0), (0, 0), (0, ci_t - ci), (0, CP - co)))
        b = jnp.pad(bias, (0, CP - co)).reshape(1, CP).astype(jnp.float32)
        return w, b

    p = {}
    s, b = bn(ks[1], C_stem)
    w, bf = fold_pad(conv_w(ks[0], 3, 3, 3, C_stem), s, b, pad_cin=False)
    p['stem_w'] = w.reshape(3 * 3 * 3, CP).astype(jnp.bfloat16)        # (27, CP)
    p['stem_b'] = bf

    s, b = bn(ks[3], C_mid)
    w, bf = fold_pad(conv_w(ks[2], 1, 1, C_stem, C_mid), s, b, pad_cin=True)
    p['c1_w'] = w.reshape(CP, CP).astype(jnp.bfloat16)
    p['c1_b'] = bf

    s, b = bn(ks[5], C_mid)
    w, bf = fold_pad(conv_w(ks[4], 3, 3, C_mid, C_mid), s, b, pad_cin=True)
    p['c2_w'] = w.reshape(9, CP, CP).astype(jnp.bfloat16)              # tap index = i*3+j
    p['c2_b'] = bf

    s, b = bn(ks[7], C_stem)
    w, bf = fold_pad(conv_w(ks[6], 1, 1, C_mid, C_stem), s, b, pad_cin=True)
    p['c3_w'] = w.reshape(CP, CP).astype(jnp.bfloat16)
    p['c3_b'] = bf

    # nn.Linear(in_size, out_size) with xavier_uniform_ weight (out, in), zero-padded to CP
    limit = (6.0 / (F_in + F_out)) ** 0.5
    wlin = jax.random.uniform(ks[8], (F_out, F_in), jnp.float32, -limit, limit)
    p['lin_w'] = jnp.pad(wlin.T, ((0, CP - F_in), (0, CP - F_out)))    # (CP, CP)
    bl = 1.0 / (F_in ** 0.5)
    blin = jax.random.uniform(ks[9], (F_out,), jnp.float32, -bl, bl)
    p['lin_b'] = jnp.pad(blin, (0, CP - F_out)).reshape(1, CP)
    return p


# ------------------------------ forward pass ---------------------------------

def resnet_encoder_forward(params, x, config):
    """x: (B, N_imgs, C, H, W) float32 (PyTorch NCHW image layout)."""
    B, N, C, H, W = x.shape
    p = params
    x = x.reshape(B * N, C, H, W)
    x = jnp.transpose(x, (0, 2, 3, 1))                            # NCHW -> NHWC

    # stem: conv(3x3, s2, p1) + folded BN + ReLU.  cin=3 -> im2col in JAX is cheap.
    # TODO(synk): maxpool + pretrained full-depth ResNet-152 are not reproducible
    #             in-script; a single bottleneck block stands in for resnet_tune.
    patches, (Ho, Wo) = _im2col(x, 3, 3, 2, 1)                    # (M, Ho*Wo, 27)
    h = pallas_mm(patches.astype(jnp.bfloat16), p['stem_w'], p['stem_b'], relu=True)

    # bottleneck residual block; GAP fused into the last conv's epilogue.
    b1 = pallas_mm(h, p['c1_w'], p['c1_b'], relu=True)                        # 1x1
    b2 = pallas_conv3x3(b1.reshape(B * N, Ho, Wo, CP), p['c2_w'], p['c2_b'])  # 3x3
    feats = pallas_mm(b2, p['c3_w'], p['c3_b'], residual=h, relu=True, gap=True)

    feats = feats.reshape(B, N, CP)                               # x.reshape(B, N, -1)
    out = pallas_head(feats, p['lin_w'], p['lin_b'], config['norm'])
    return out[:, :config['linear']['out_size']]


# ---------------------------------- main -------------------------------------

if __name__ == "__main__":
    config = {
        'n_layers': 2,
        'linear': {'in_size': 16, 'out_size': 8},
        'norm': True,
    }
    key = jax.random.PRNGKey(0)
    k_param, k_x = jax.random.split(key)
    params = init_params(k_param, config)

    # (B, N_imgs, C, H, W) just like the PyTorch module's 5-D input
    x = jax.random.normal(k_x, (2, 2, 3, 16, 16), jnp.float32)

    fwd = jax.jit(functools.partial(resnet_encoder_forward, config=config))
    out = jax.block_until_ready(fwd(params, x))

    assert out.shape == (2, config['linear']['out_size']), out.shape
    assert bool(jnp.all(jnp.isfinite(out)))
    # norm=True => rows are unit L2 norm
    assert bool(jnp.allclose(jnp.linalg.norm(out, axis=1), 1.0, atol=1e-4))
    print("KERNEL_OK")
</pallas_src>

<mosaic_0001>
module attributes {stable_mosaic.version = 11 : i64} {
  func.func @_mm_kernel(%arg0: i32, %arg1: memref<1x64x128xbf16, #tpu.memory_space<vmem>>, %arg2: memref<128x128xbf16, #tpu.memory_space<vmem>>, %arg3: memref<1x128xf32, #tpu.memory_space<vmem>>, %arg4: memref<1x64x128xbf16, #tpu.memory_space<vmem>>) attributes {dimension_semantics = [#tpu.dimension_semantics<parallel>], iteration_bounds = array<i64: 4>, scalar_prefetch = 0 : i64, scratch_operands = 0 : i64, tpu.core_type = #tpu.core_type<tc>, window_params = [{transform_indices = @transform_0, window_bounds = array<i64: 1, 64, 128>}, {pipeline_mode = #tpu.pipeline_mode<synchronous>, transform_indices = @transform_1, window_bounds = array<i64: 128, 128>}, {pipeline_mode = #tpu.pipeline_mode<synchronous>, transform_indices = @transform_2, window_bounds = array<i64: 1, 128>}, {transform_indices = @transform_3, window_bounds = array<i64: 1, 64, 128>}]} {
    %c0 = arith.constant 0 : index
    %c0_0 = arith.constant 0 : index
    %c0_1 = arith.constant 0 : index
    %0 = vector.load %arg1[%c0, %c0_0, %c0_1] : memref<1x64x128xbf16, #tpu.memory_space<vmem>>, vector<1x64x128xbf16>
    %1 = vector.shape_cast %0 : vector<1x64x128xbf16> to vector<64x128xbf16>
    %c0_2 = arith.constant 0 : index
    %c0_3 = arith.constant 0 : index
    %2 = vector.load %arg2[%c0_2, %c0_3] : memref<128x128xbf16, #tpu.memory_space<vmem>>, vector<128x128xbf16>
    %cst = arith.constant dense<0.000000e+00> : vector<64x128xf32>
    %3 = tpu.matmul %1, %2, %cst {dimension_numbers = #tpu.dot_dimension_numbers<[1], [0], [0], [1], [0, 0, 1, 1], [], []>} : vector<64x128xbf16>, vector<128x128xbf16>, vector<64x128xf32> -> vector<64x128xf32>
    %c0_4 = arith.constant 0 : index
    %c0_5 = arith.constant 0 : index
    %4 = vector.load %arg3[%c0_4, %c0_5] : memref<1x128xf32, #tpu.memory_space<vmem>>, vector<1x128xf32>
    %5 = vector.broadcast %4 : vector<1x128xf32> to vector<64x128xf32>
    %6 = arith.addf %3, %5 : vector<64x128xf32>
    %cst_6 = arith.constant 0.000000e+00 : f32
    %7 = vector.broadcast %cst_6 : f32 to vector<64x128xf32>
    %8 = arith.maximumf %6, %7 : vector<64x128xf32>
    %9 = vector.shape_cast %8 : vector<64x128xf32> to vector<1x64x128xf32>
    %10 = arith.truncf %9 : vector<1x64x128xf32> to vector<1x64x128xbf16>
    %c0_7 = arith.constant 0 : index
    %c0_8 = arith.constant 0 : index
    %c0_9 = arith.constant 0 : index
    %11 = vector.load %arg4[%c0_7, %c0_8, %c0_9] : memref<1x64x128xbf16, #tpu.memory_space<vmem>>, vector<1x64x128xbf16>
    tpu.vector_store %arg4[%c0_7, %c0_8, %c0_9], %10 {strides = array<i32>} : memref<1x64x128xbf16, #tpu.memory_space<vmem>>, vector<1x64x128xbf16>,
    return
  }
  func.func @transform_0(%arg0: i32) -> (i32, i32, i32) {
    %c0_i32 = arith.constant 0 : i32
    %c0_i32_0 = arith.constant 0 : i32
    %c0_i32_1 = arith.constant 0 : i32
    return %arg0, %c0_i32, %c0_i32_0 : i32, i32, i32
  }
  func.func @transform_1(%arg0: i32) -> (i32, i32) {
    %c0_i32 = arith.constant 0 : i32
    %c0_i32_0 = arith.constant 0 : i32
    %c0_i32_1 = arith.constant 0 : i32
    return %c0_i32, %c0_i32_0 : i32, i32
  }
  func.func @transform_2(%arg0: i32) -> (i32, i32) {
    %c0_i32 = arith.constant 0 : i32
    %c0_i32_0 = arith.constant 0 : i32
    %c0_i32_1 = arith.constant 0 : i32
    return %c0_i32, %c0_i32_0 : i32, i32
  }
  func.func @transform_3(%arg0: i32) -> (i32, i32, i32) {
    %c0_i32 = arith.constant 0 : i32
    %c0_i32_0 = arith.constant 0 : i32
    %c0_i32_1 = arith.constant 0 : i32
    return %arg0, %c0_i32, %c0_i32_0 : i32, i32, i32
  }
}

module attributes {stable_mosaic.version = 11 : i64} {
  func.func @_mm_kernel(%arg0: i32, %arg1: memref<1x64x27xbf16, #tpu.memory_space<vmem>>, %arg2: memref<27x128xbf16, #tpu.memory_space<vmem>>, %arg3: memref<1x128xf32, #tpu.memory_space<vmem>>, %arg4: memref<1x64x128xbf16, #tpu.memory_space<vmem>>) attributes {dimension_semantics = [#tpu.dimension_semantics<parallel>], iteration_bounds = array<i64: 4>, scalar_prefetch = 0 : i64, scratch_operands = 0 : i64, tpu.core_type = #tpu.core_type<tc>, window_params = [{transform_indices = @transform_0, window_bounds = array<i64: 1, 64, 27>}, {pipeline_mode = #tpu.pipeline_mode<synchronous>, transform_indices = @transform_1, window_bounds = array<i64: 27, 128>}, {pipeline_mode = #tpu.pipeline_mode<synchronous>, transform_indices = @transform_2, window_bounds = array<i64: 1, 128>}, {transform_indices = @transform_3, window_bounds = array<i64: 1, 64, 128>}]} {
    %c0 = arith.constant 0 : index
    %c0_0 = arith.constant 0 : index
    %c0_1 = arith.constant 0 : index
    %0 = vector.load %arg1[%c0, %c0_0, %c0_1] : memref<1x64x27xbf16, #tpu.memory_space<vmem>>, vector<1x64x27xbf16>
    %1 = vector.shape_cast %0 : vector<1x64x27xbf16> to vector<64x27xbf16>
    %c0_2 = arith.constant 0 : index
    %c0_3 = arith.constant 0 : index
    %2 = vector.load %arg2[%c0_2, %c0_3] : memref<27x128xbf16, #tpu.memory_space<vmem>>, vector<27x128xbf16>
    %cst = arith.constant dense<0.000000e+00> : vector<64x128xf32>
    %3 = tpu.matmul %1, %2, %cst {dimension_numbers = #tpu.dot_dimension_numbers<[1], [0], [0], [1], [0, 0, 1, 1], [], []>} : vector<64x27xbf16>, vector<27x128xbf16>, vector<64x128xf32> -> vector<64x128xf32>
    %c0_4 = arith.constant 0 : index
    %c0_5 = arith.constant 0 : index
    %4 = vector.load %arg3[%c0_4, %c0_5] : memref<1x128xf32, #tpu.memory_space<vmem>>, vector<1x128xf32>
    %5 = vector.broadcast %4 : vector<1x128xf32> to vector<64x128xf32>
    %6 = arith.addf %3, %5 : vector<64x128xf32>
    %cst_6 = arith.constant 0.000000e+00 : f32
    %7 = vector.broadcast %cst_6 : f32 to vector<64x128xf32>
    %8 = arith.maximumf %6, %7 : vector<64x128xf32>
    %9 = vector.shape_cast %8 : vector<64x128xf32> to vector<1x64x128xf32>
    %10 = arith.truncf %9 : vector<1x64x128xf32> to vector<1x64x128xbf16>
    %c0_7 = arith.constant 0 : index
    %c0_8 = arith.constant 0 : index
    %c0_9 = arith.constant 0 : index
    %11 = vector.load %arg4[%c0_7, %c0_8, %c0_9] : memref<1x64x128xbf16, #tpu.memory_space<vmem>>, vector<1x64x128xbf16>
    tpu.vector_store %arg4[%c0_7, %c0_8, %c0_9], %10 {strides = array<i32>} : memref<1x64x128xbf16, #tpu.memory_space<vmem>>, vector<1x64x128xbf16>,
    return
  }
  func.func @transform_0(%arg0: i32) -> (i32, i32, i32) {
    %c0_i32 = arith.constant 0 : i32
    %c0_i32_0 = arith.constant 0 : i32
    %c0_i32_1 = arith.constant 0 : i32
    return %arg0, %c0_i32, %c0_i32_0 : i32, i32, i32
  }
  func.func @transform_1(%arg0: i32) -> (i32, i32) {
    %c0_i32 = arith.constant 0 : i32
    %c0_i32_0 = arith.constant 0 : i32
    %c0_i32_1 = arith.constant 0 : i32
    return %c0_i32, %c0_i32_0 : i32, i32
  }
  func.func @transform_2(%arg0: i32) -> (i32, i32) {
    %c0_i32 = arith.constant 0 : i32
    %c0_i32_0 = arith.constant 0 : i32
    %c0_i32_1 = arith.constant 0 : i32
    return %c0_i32, %c0_i32_0 : i32, i32
  }
  func.func @transform_3(%arg0: i32) -> (i32, i32, i32) {
    %c0_i32 = arith.constant 0 : i32
    %c0_i32_0 = arith.constant 0 : i32
    %c0_i32_1 = arith.constant 0 : i32
    return %arg0, %c0_i32, %c0_i32_0 : i32, i32, i32
  }
}

module attributes {stable_mosaic.version = 11 : i64} {
  func.func @_head_kernel(%arg0: memref<2x2x128xf32, #tpu.memory_space<vmem>>, %arg1: memref<128x128xf32, #tpu.memory_space<vmem>>, %arg2: memref<1x128xf32, #tpu.memory_space<vmem>>, %arg3: memref<2x128xf32, #tpu.memory_space<vmem>>) attributes {dimension_semantics = [], scalar_prefetch = 0 : i64, scratch_operands = 0 : i64, tpu.core_type = #tpu.core_type<tc>} {
    %c0 = arith.constant 0 : index
    %c0_0 = arith.constant 0 : index
    %c0_1 = arith.constant 0 : index
    %0 = vector.load %arg0[%c0, %c0_0, %c0_1] : memref<2x2x128xf32, #tpu.memory_space<vmem>>, vector<2x2x128xf32>
    %cst = arith.constant dense<0.000000e+00> : vector<2x128xf32>
    %1 = vector.multi_reduction <add>, %0, %cst [1] : vector<2x2x128xf32> to vector<2x128xf32>
    %cst_2 = arith.constant 2.000000e+00 : f32
    %2 = vector.broadcast %cst_2 : f32 to vector<2x128xf32>
    %3 = arith.divf %1, %2 : vector<2x128xf32>
    %c0_3 = arith.constant 0 : index
    %c0_4 = arith.constant 0 : index
    %4 = vector.load %arg1[%c0_3, %c0_4] : memref<128x128xf32, #tpu.memory_space<vmem>>, vector<128x128xf32>
    %cst_5 = arith.constant dense<0.000000e+00> : vector<2x128xf32>
    %5 = tpu.matmul %3, %4, %cst_5 {dimension_numbers = #tpu.dot_dimension_numbers<[1], [0], [0], [1], [0, 0, 1, 1], [], []>} : vector<2x128xf32>, vector<128x128xf32>, vector<2x128xf32> -> vector<2x128xf32>
    %c0_6 = arith.constant 0 : index
    %c0_7 = arith.constant 0 : index
    %6 = vector.load %arg2[%c0_6, %c0_7] : memref<1x128xf32, #tpu.memory_space<vmem>>, vector<1x128xf32>
    %7 = vector.broadcast %6 : vector<1x128xf32> to vector<2x128xf32>
    %8 = arith.addf %5, %7 : vector<2x128xf32>
    %9 = arith.mulf %8, %8 : vector<2x128xf32>
    %cst_8 = arith.constant dense<0.000000e+00> : vector<2xf32>
    %10 = vector.multi_reduction <add>, %9, %cst_8 [1] : vector<2x128xf32> to vector<2xf32>
    %11 = vector.shape_cast %10 : vector<2xf32> to vector<2x1xf32>
    %cst_9 = arith.constant 1.000000e-24 : f32
    %12 = vector.broadcast %cst_9 : f32 to vector<2x1xf32>
    %13 = arith.maximumf %11, %12 : vector<2x1xf32>
    %14 = math.rsqrt %13 : vector<2x1xf32>
    %15 = vector.broadcast %14 : vector<2x1xf32> to vector<2x128xf32>
    %16 = arith.mulf %8, %15 : vector<2x128xf32>
    %c0_10 = arith.constant 0 : index
    %c0_11 = arith.constant 0 : index
    %17 = vector.load %arg3[%c0_10, %c0_11] : memref<2x128xf32, #tpu.memory_space<vmem>>, vector<2x128xf32>
    tpu.vector_store %arg3[%c0_10, %c0_11], %16 {strides = array<i32>} : memref<2x128xf32, #tpu.memory_space<vmem>>, vector<2x128xf32>,
    return
  }
}

module attributes {stable_mosaic.version = 11 : i64} {
  func.func @_mm_res_kernel(%arg0: i32, %arg1: memref<1x64x128xbf16, #tpu.memory_space<vmem>>, %arg2: memref<128x128xbf16, #tpu.memory_space<vmem>>, %arg3: memref<1x128xf32, #tpu.memory_space<vmem>>, %arg4: memref<1x64x128xbf16, #tpu.memory_space<vmem>>, %arg5: memref<1x1x128xf32, #tpu.memory_space<vmem>>) attributes {dimension_semantics = [#tpu.dimension_semantics<parallel>], iteration_bounds = array<i64: 4>, scalar_prefetch = 0 : i64, scratch_operands = 0 : i64, tpu.core_type = #tpu.core_type<tc>, window_params = [{transform_indices = @transform_0, window_bounds = array<i64: 1, 64, 128>}, {pipeline_mode = #tpu.pipeline_mode<synchronous>, transform_indices = @transform_1, window_bounds = array<i64: 128, 128>}, {pipeline_mode = #tpu.pipeline_mode<synchronous>, transform_indices = @transform_2, window_bounds = array<i64: 1, 128>}, {transform_indices = @transform_3, window_bounds = array<i64: 1, 64, 128>}, {transform_indices = @transform_4, window_bounds = array<i64: 1, 1, 128>}]} {
    %c0 = arith.constant 0 : index
    %c0_0 = arith.constant 0 : index
    %c0_1 = arith.constant 0 : index
    %0 = vector.load %arg1[%c0, %c0_0, %c0_1] : memref<1x64x128xbf16, #tpu.memory_space<vmem>>, vector<1x64x128xbf16>
    %1 = vector.shape_cast %0 : vector<1x64x128xbf16> to vector<64x128xbf16>
    %c0_2 = arith.constant 0 : index
    %c0_3 = arith.constant 0 : index
    %2 = vector.load %arg2[%c0_2, %c0_3] : memref<128x128xbf16, #tpu.memory_space<vmem>>, vector<128x128xbf16>
    %cst = arith.constant dense<0.000000e+00> : vector<64x128xf32>
    %3 = tpu.matmul %1, %2, %cst {dimension_numbers = #tpu.dot_dimension_numbers<[1], [0], [0], [1], [0, 0, 1, 1], [], []>} : vector<64x128xbf16>, vector<128x128xbf16>, vector<64x128xf32> -> vector<64x128xf32>
    %c0_4 = arith.constant 0 : index
    %c0_5 = arith.constant 0 : index
    %4 = vector.load %arg3[%c0_4, %c0_5] : memref<1x128xf32, #tpu.memory_space<vmem>>, vector<1x128xf32>
    %5 = vector.broadcast %4 : vector<1x128xf32> to vector<64x128xf32>
    %6 = arith.addf %3, %5 : vector<64x128xf32>
    %c0_6 = arith.constant 0 : index
    %c0_7 = arith.constant 0 : index
    %c0_8 = arith.constant 0 : index
    %7 = vector.load %arg4[%c0_6, %c0_7, %c0_8] : memref<1x64x128xbf16, #tpu.memory_space<vmem>>, vector<1x64x128xbf16>
    %8 = vector.shape_cast %7 : vector<1x64x128xbf16> to vector<64x128xbf16>
    %9 = arith.extf %8 : vector<64x128xbf16> to vector<64x128xf32>
    %10 = arith.addf %6, %9 : vector<64x128xf32>
    %cst_9 = arith.constant 0.000000e+00 : f32
    %11 = vector.broadcast %cst_9 : f32 to vector<64x128xf32>
    %12 = arith.maximumf %10, %11 : vector<64x128xf32>
    %cst_10 = arith.constant dense<0.000000e+00> : vector<128xf32>
    %13 = vector.multi_reduction <add>, %12, %cst_10 [0] : vector<64x128xf32> to vector<128xf32>
    %cst_11 = arith.constant 6.400000e+01 : f32
    %14 = vector.broadcast %cst_11 : f32 to vector<128xf32>
    %15 = arith.divf %13, %14 : vector<128xf32>
    %16 = vector.shape_cast %15 : vector<128xf32> to vector<1x1x128xf32>
    %c0_12 = arith.constant 0 : index
    %c0_13 = arith.constant 0 : index
    %c0_14 = arith.constant 0 : index
    %17 = vector.load %arg5[%c0_12, %c0_13, %c0_14] : memref<1x1x128xf32, #tpu.memory_space<vmem>>, vector<1x1x128xf32>
    tpu.vector_store %arg5[%c0_12, %c0_13, %c0_14], %16 {strides = array<i32>} : memref<1x1x128xf32, #tpu.memory_space<vmem>>, vector<1x1x128xf32>,
    return
  }
  func.func @transform_0(%arg0: i32) -> (i32, i32, i32) {
    %c0_i32 = arith.constant 0 : i32
    %c0_i32_0 = arith.constant 0 : i32
    %c0_i32_1 = arith.constant 0 : i32
    return %arg0, %c0_i32, %c0_i32_0 : i32, i32, i32
  }
  func.func @transform_1(%arg0: i32) -> (i32, i32) {
    %c0_i32 = arith.constant 0 : i32
    %c0_i32_0 = arith.constant 0 : i32
    %c0_i32_1 = arith.constant 0 : i32
    return %c0_i32, %c0_i32_0 : i32, i32
  }
  func.func @transform_2(%arg0: i32) -> (i32, i32) {
    %c0_i32 = arith.constant 0 : i32
    %c0_i32_0 = arith.constant 0 : i32
    %c0_i32_1 = arith.constant 0 : i32
    return %c0_i32, %c0_i32_0 : i32, i32
  }
  func.func @transform_3(%arg0: i32) -> (i32, i32, i32) {
    %c0_i32 = arith.constant 0 : i32
    %c0_i32_0 = arith.constant 0 : i32
    %c0_i32_1 = arith.constant 0 : i32
    return %arg0, %c0_i32, %c0_i32_0 : i32, i32, i32
  }
  func.func @transform_4(%arg0: i32) -> (i32, i32, i32) {
    %c0_i32 = arith.constant 0 : i32
    %c0_i32_0 = arith.constant 0 : i32
    %c0_i32_1 = arith.constant 0 : i32
    return %arg0, %c0_i32, %c0_i32_0 : i32, i32, i32
  }
}

module attributes {stable_mosaic.version = 11 : i64} {
  func.func @_conv3x3_kernel(%arg0: i32, %arg1: memref<1x10x10x128xbf16, #tpu.memory_space<vmem>>, %arg2: memref<9x128x128xbf16, #tpu.memory_space<vmem>>, %arg3: memref<1x128xf32, #tpu.memory_space<vmem>>, %arg4: memref<1x64x128xbf16, #tpu.memory_space<vmem>>) attributes {dimension_semantics = [#tpu.dimension_semantics<parallel>], iteration_bounds = array<i64: 4>, scalar_prefetch = 0 : i64, scratch_operands = 0 : i64, tpu.core_type = #tpu.core_type<tc>, window_params = [{transform_indices = @transform_0, window_bounds = array<i64: 1, 10, 10, 128>}, {pipeline_mode = #tpu.pipeline_mode<synchronous>, transform_indices = @transform_1, window_bounds = array<i64: 9, 128, 128>}, {pipeline_mode = #tpu.pipeline_mode<synchronous>, transform_indices = @transform_2, window_bounds = array<i64: 1, 128>}, {transform_indices = @transform_3, window_bounds = array<i64: 1, 64, 128>}]} {
    %c0 = arith.constant 0 : index
    %c0_0 = arith.constant 0 : index
    %c0_1 = arith.constant 0 : index
    %c0_2 = arith.constant 0 : index
    %0 = vector.load %arg1[%c0, %c0_0, %c0_1, %c0_2] : memref<1x10x10x128xbf16, #tpu.memory_space<vmem>>, vector<1x10x10x128xbf16>
    %1 = vector.shape_cast %0 : vector<1x10x10x128xbf16> to vector<10x10x128xbf16>
    %cst = arith.constant 0.000000e+00 : f32
    %2 = vector.broadcast %cst : f32 to vector<64x128xf32>
    %3 = vector.extract_strided_slice %1 {offsets = [0, 0, 0], sizes = [8, 8, 128], strides = [1, 1, 1]} : vector<10x10x128xbf16> to vector<8x8x128xbf16>
    %4 = vector.shape_cast %3 : vector<8x8x128xbf16> to vector<64x128xbf16>
    %c0_3 = arith.constant 0 : index
    %c0_4 = arith.constant 0 : index
    %c0_5 = arith.constant 0 : index
    %5 = vector.load %arg2[%c0_3, %c0_4, %c0_5] : memref<9x128x128xbf16, #tpu.memory_space<vmem>>, vector<1x128x128xbf16>
    %6 = vector.shape_cast %5 : vector<1x128x128xbf16> to vector<128x128xbf16>
    %cst_6 = arith.constant dense<0.000000e+00> : vector<64x128xf32>
    %7 = tpu.matmul %4, %6, %cst_6 {dimension_numbers = #tpu.dot_dimension_numbers<[1], [0], [0], [1], [0, 0, 1, 1], [], []>} : vector<64x128xbf16>, vector<128x128xbf16>, vector<64x128xf32> -> vector<64x128xf32>
    %8 = arith.addf %2, %7 : vector<64x128xf32>
    %9 = vector.extract_strided_slice %1 {offsets = [0, 1, 0], sizes = [8, 8, 128], strides = [1, 1, 1]} : vector<10x10x128xbf16> to vector<8x8x128xbf16>
    %10 = vector.shape_cast %9 : vector<8x8x128xbf16> to vector<64x128xbf16>
    %c1 = arith.constant 1 : index
    %c0_7 = arith.constant 0 : index
    %c0_8 = arith.constant 0 : index
    %11 = vector.load %arg2[%c1, %c0_7, %c0_8] : memref<9x128x128xbf16, #tpu.memory_space<vmem>>, vector<1x128x128xbf16>
    %12 = vector.shape_cast %11 : vector<1x128x128xbf16> to vector<128x128xbf16>
    %cst_9 = arith.constant dense<0.000000e+00> : vector<64x128xf32>
    %13 = tpu.matmul %10, %12, %cst_9 {dimension_numbers = #tpu.dot_dimension_numbers<[1], [0], [0], [1], [0, 0, 1, 1], [], []>} : vector<64x128xbf16>, vector<128x128xbf16>, vector<64x128xf32> -> vector<64x128xf32>
    %14 = arith.addf %8, %13 : vector<64x128xf32>
    %15 = vector.extract_strided_slice %1 {offsets = [0, 2, 0], sizes = [8, 8, 128], strides = [1, 1, 1]} : vector<10x10x128xbf16> to vector<8x8x128xbf16>
    %16 = vector.shape_cast %15 : vector<8x8x128xbf16> to vector<64x128xbf16>
    %c2 = arith.constant 2 : index
    %c0_10 = arith.constant 0 : index
    %c0_11 = arith.constant 0 : index
    %17 = vector.load %arg2[%c2, %c0_10, %c0_11] : memref<9x128x128xbf16, #tpu.memory_space<vmem>>, vector<1x128x128xbf16>
    %18 = vector.shape_cast %17 : vector<1x128x128xbf16> to vector<128x128xbf16>
    %cst_12 = arith.constant dense<0.000000e+00> : vector<64x128xf32>
    %19 = tpu.matmul %16, %18, %cst_12 {dimension_numbers = #tpu.dot_dimension_numbers<[1], [0], [0], [1], [0, 0, 1, 1], [], []>} : vector<64x128xbf16>, vector<128x128xbf16>, vector<64x128xf32> -> vector<64x128xf32>
    %20 = arith.addf %14, %19 : vector<64x128xf32>
    %21 = vector.extract_strided_slice %1 {offsets = [1, 0, 0], sizes = [8, 8, 128], strides = [1, 1, 1]} : vector<10x10x128xbf16> to vector<8x8x128xbf16>
    %22 = vector.shape_cast %21 : vector<8x8x128xbf16> to vector<64x128xbf16>
    %c3 = arith.constant 3 : index
    %c0_13 = arith.constant 0 : index
    %c0_14 = arith.constant 0 : index
    %23 = vector.load %arg2[%c3, %c0_13, %c0_14] : memref<9x128x128xbf16, #tpu.memory_space<vmem>>, vector<1x128x128xbf16>
    %24 = vector.shape_cast %23 : vector<1x128x128xbf16> to vector<128x128xbf16>
    %cst_15 = arith.constant dense<0.000000e+00> : vector<64x128xf32>
    %25 = tpu.matmul %22, %24, %cst_15 {dimension_numbers = #tpu.dot_dimension_numbers<[1], [0], [0], [1], [0, 0, 1, 1], [], []>} : vector<64x128xbf16>, vector<128x128xbf16>, vector<64x128xf32> -> vector<64x128xf32>
    %26 = arith.addf %20, %25 : vector<64x128xf32>
    %27 = vector.extract_strided_slice %1 {offsets = [1, 1, 0], sizes = [8, 8, 128], strides = [1, 1, 1]} : vector<10x10x128xbf16> to vector<8x8x128xbf16>
    %28 = vector.shape_cast %27 : vector<8x8x128xbf16> to vector<64x128xbf16>
    %c4 = arith.constant 4 : index
    %c0_16 = arith.constant 0 : index
    %c0_17 = arith.constant 0 : index
    %29 = vector.load %arg2[%c4, %c0_16, %c0_17] : memref<9x128x128xbf16, #tpu.memory_space<vmem>>, vector<1x128x128xbf16>
    %30 = vector.shape_cast %29 : vector<1x128x128xbf16> to vector<128x128xbf16>
    %cst_18 = arith.constant dense<0.000000e+00> : vector<64x128xf32>
    %31 = tpu.matmul %28, %30, %cst_18 {dimension_numbers = #tpu.dot_dimension_numbers<[1], [0], [0], [1], [0, 0, 1, 1], [], []>} : vector<64x128xbf16>, vector<128x128xbf16>, vector<64x128xf32> -> vector<64x128xf32>
    %32 = arith.addf %26, %31 : vector<64x128xf32>
    %33 = vector.extract_strided_slice %1 {offsets = [1, 2, 0], sizes = [8, 8, 128], strides = [1, 1, 1]} : vector<10x10x128xbf16> to vector<8x8x128xbf16>
    %34 = vector.shape_cast %33 : vector<8x8x128xbf16> to vector<64x128xbf16>
    %c5 = arith.constant 5 : index
    %c0_19 = arith.constant 0 : index
    %c0_20 = arith.constant 0 : index
    %35 = vector.load %arg2[%c5, %c0_19, %c0_20] : memref<9x128x128xbf16, #tpu.memory_space<vmem>>, vector<1x128x128xbf16>
    %36 = vector.shape_cast %35 : vector<1x128x128xbf16> to vector<128x128xbf16>
    %cst_21 = arith.constant dense<0.000000e+00> : vector<64x128xf32>
    %37 = tpu.matmul %34, %36, %cst_21 {dimension_numbers = #tpu.dot_dimension_numbers<[1], [0], [0], [1], [0, 0, 1, 1], [], []>} : vector<64x128xbf16>, vector<128x128xbf16>, vector<64x128xf32> -> vector<64x128xf32>
    %38 = arith.addf %32, %37 : vector<64x128xf32>
    %39 = vector.extract_strided_slice %1 {offsets = [2, 0, 0], sizes = [8, 8, 128], strides = [1, 1, 1]} : vector<10x10x128xbf16> to vector<8x8x128xbf16>
    %40 = vector.shape_cast %39 : vector<8x8x128xbf16> to vector<64x128xbf16>
    %c6 = arith.constant 6 : index
    %c0_22 = arith.constant 0 : index
    %c0_23 = arith.constant 0 : index
    %41 = vector.load %arg2[%c6, %c0_22, %c0_23] : memref<9x128x128xbf16, #tpu.memory_space<vmem>>, vector<1x128x128xbf16>
    %42 = vector.shape_cast %41 : vector<1x128x128xbf16> to vector<128x128xbf16>
    %cst_24 = arith.constant dense<0.000000e+00> : vector<64x128xf32>
    %43 = tpu.matmul %40, %42, %cst_24 {dimension_numbers = #tpu.dot_dimension_numbers<[1], [0], [0], [1], [0, 0, 1, 1], [], []>} : vector<64x128xbf16>, vector<128x128xbf16>, vector<64x128xf32> -> vector<64x128xf32>
    %44 = arith.addf %38, %43 : vector<64x128xf32>
    %45 = vector.extract_strided_slice %1 {offsets = [2, 1, 0], sizes = [8, 8, 128], strides = [1, 1, 1]} : vector<10x10x128xbf16> to vector<8x8x128xbf16>
    %46 = vector.shape_cast %45 : vector<8x8x128xbf16> to vector<64x128xbf16>
    %c7 = arith.constant 7 : index
    %c0_25 = arith.constant 0 : index
    %c0_26 = arith.constant 0 : index
    %47 = vector.load %arg2[%c7, %c0_25, %c0_26] : memref<9x128x128xbf16, #tpu.memory_space<vmem>>, vector<1x128x128xbf16>
    %48 = vector.shape_cast %47 : vector<1x128x128xbf16> to vector<128x128xbf16>
    %cst_27 = arith.constant dense<0.000000e+00> : vector<64x128xf32>
    %49 = tpu.matmul %46, %48, %cst_27 {dimension_numbers = #tpu.dot_dimension_numbers<[1], [0], [0], [1], [0, 0, 1, 1], [], []>} : vector<64x128xbf16>, vector<128x128xbf16>, vector<64x128xf32> -> vector<64x128xf32>
    %50 = arith.addf %44, %49 : vector<64x128xf32>
    %51 = vector.extract_strided_slice %1 {offsets = [2, 2, 0], sizes = [8, 8, 128], strides = [1, 1, 1]} : vector<10x10x128xbf16> to vector<8x8x128xbf16>
    %52 = vector.shape_cast %51 : vector<8x8x128xbf16> to vector<64x128xbf16>
    %c8 = arith.constant 8 : index
    %c0_28 = arith.constant 0 : index
    %c0_29 = arith.constant 0 : index
    %53 = vector.load %arg2[%c8, %c0_28, %c0_29] : memref<9x128x128xbf16, #tpu.memory_space<vmem>>, vector<1x128x128xbf16>
    %54 = vector.shape_cast %53 : vector<1x128x128xbf16> to vector<128x128xbf16>
    %cst_30 = arith.constant dense<0.000000e+00> : vector<64x128xf32>
    %55 = tpu.matmul %52, %54, %cst_30 {dimension_numbers = #tpu.dot_dimension_numbers<[1], [0], [0], [1], [0, 0, 1, 1], [], []>} : vector<64x128xbf16>, vector<128x128xbf16>, vector<64x128xf32> -> vector<64x128xf32>
    %56 = arith.addf %50, %55 : vector<64x128xf32>
    %c0_31 = arith.constant 0 : index
    %c0_32 = arith.constant 0 : index
    %57 = vector.load %arg3[%c0_31, %c0_32] : memref<1x128xf32, #tpu.memory_space<vmem>>, vector<1x128xf32>
    %58 = vector.broadcast %57 : vector<1x128xf32> to vector<64x128xf32>
    %59 = arith.addf %56, %58 : vector<64x128xf32>
    %cst_33 = arith.constant 0.000000e+00 : f32
    %60 = vector.broadcast %cst_33 : f32 to vector<64x128xf32>
    %61 = arith.maximumf %59, %60 : vector<64x128xf32>
    %62 = vector.shape_cast %61 : vector<64x128xf32> to vector<1x64x128xf32>
    %63 = arith.truncf %62 : vector<1x64x128xf32> to vector<1x64x128xbf16>
    %c0_34 = arith.constant 0 : index
    %c0_35 = arith.constant 0 : index
    %c0_36 = arith.constant 0 : index
    %64 = vector.load %arg4[%c0_34, %c0_35, %c0_36] : memref<1x64x128xbf16, #tpu.memory_space<vmem>>, vector<1x64x128xbf16>
    tpu.vector_store %arg4[%c0_34, %c0_35, %c0_36], %63 {strides = array<i32>} : memref<1x64x128xbf16, #tpu.memory_space<vmem>>, vector<1x64x128xbf16>,
    return
  }
  func.func @transform_0(%arg0: i32) -> (i32, i32, i32, i32) {
    %c0_i32 = arith.constant 0 : i32
    %c0_i32_0 = arith.constant 0 : i32
    %c0_i32_1 = arith.constant 0 : i32
    %c0_i32_2 = arith.constant 0 : i32
    return %arg0, %c0_i32, %c0_i32_0, %c0_i32_1 : i32, i32, i32, i32
  }
  func.func @transform_1(%arg0: i32) -> (i32, i32, i32) {
    %c0_i32 = arith.constant 0 : i32
    %c0_i32_0 = arith.constant 0 : i32
    %c0_i32_1 = arith.constant 0 : i32
    %c0_i32_2 = arith.constant 0 : i32
    return %c0_i32, %c0_i32_0, %c0_i32_1 : i32, i32, i32
  }
  func.func @transform_2(%arg0: i32) -> (i32, i32) {
    %c0_i32 = arith.constant 0 : i32
    %c0_i32_0 = arith.constant 0 : i32
    %c0_i32_1 = arith.constant 0 : i32
    return %c0_i32, %c0_i32_0 : i32, i32
  }
  func.func @transform_3(%arg0: i32) -> (i32, i32, i32) {
    %c0_i32 = arith.constant 0 : i32
    %c0_i32_0 = arith.constant 0 : i32
    %c0_i32_1 = arith.constant 0 : i32
    return %arg0, %c0_i32, %c0_i32_0 : i32, i32, i32
  }
}

</mosaic_0001>

<llo_original>
// kernel: resnet_encoder_forward.5
$region0: #{resnet_encoder_forward.5}
  #allocation0 [shape = 'u32[]', space=smem, size = 0x4, offset = 0x4, fixed_abs, tag = 'smem constant byte address 0x4 - core index']
  #allocation1 [shape = 'u32[72,128]{1,0:T(1,128)}', space=vmem, size = 0x9000, scoped, tag = 'internal scratch']
  %s0 = inlined_call_operand.vmem [shape: bf16[4,64,27], index: 0, kind: input, shape index: {}]
  %s1 = inlined_call_operand.vmem [shape: bf16[27,128], index: 1, kind: input, shape index: {}]
  %s2 = inlined_call_operand.vmem [shape: f32[1,128], index: 2, kind: input, shape index: {}]
  %s3 = inlined_call_operand.vmem [shape: bf16[4,64,128], index: 3, kind: output, shape index: {}]
  %s4 = sld [smem:[#allocation0]]
  $region45: #{resnet_encoder_forward.5} parent=0
    _
  %s6 = ssub.s32 1, %s4
  %s7 = scalar_select 0, %s6, %s4
  loop: start=0, step=1, limit=6
  $region2: #{resnet_encoder_forward.5} parent=0 // loop_pre_header
    _
  $region3: #{resnet_encoder_forward.5} parent=0 // loop_header
    %s9 = sphi 0, %s13
    %p10 = scmp.ge.s32.totalorder %s9, 6
    %s19 = sphi 0, %s21
    %s22 = sphi 0, %s19
    %s23 = sphi 0, %s22
    %s39 = sphi 0, %s23
    %s43 = sphi 0, %s43
    %s45 = sphi 0, %s43
    %s46 = sphi 0, %s45
    %s60 = sphi 0, %s46
    %s64 = sphi 0, %s64
    %s66 = sphi 0, %s64
    %s67 = sphi 0, %s66
    %s81 = sphi 0, %s67
    %s87 = sphi 0, %s89
    %s90 = sphi 0, %s87
    %s91 = sphi 0, %s90
    %s107 = sphi 0, %s91
  $region4: #{resnet_encoder_forward.5} parent=0 // loop_header_branch
    %12 = sbr.rel (%p10) target = $region8
  $region5: #{resnet_encoder_forward.5} parent=0 // loop_body
    %s14 = ssub.s32 %s9, 1
    %s15 = ssub.s32 %s9, 2
    %s16 = sadd.s32 %s9, 1
    %s17 = ssub.s32 %s9, %s16
    %p18 = scmp.eq.s32.totalorder %s17, 0
    %s20 = sadd.s32 %s19, 1
    %s21 = scalar_select %p18, %s19, %s20
    %p24 = pneg %p18
    %p25 = scmp.eq.s32.totalorder %s9, 3
    %p26 = por %p24, %p25
    %p27 = scmp.ne.s32.totalorder %s19, %s22
    %p28 = scmp.eq.s32.totalorder %s9, 0
    %p29 = por %p27, %p28
    %p30 = scmp.ne.s32.totalorder %s19, %s22
    %p31 = scmp.eq.s32.totalorder %s14, 3
    %p32 = por %p30, %p31
    %p33 = scmp.ne.s32.totalorder %s22, %s23
    %p34 = scmp.eq.s32.totalorder %s14, 0
    %p35 = por %p33, %p34
    %p36 = scmp.ne.s32.totalorder %s22, %s23
    %p37 = scmp.eq.s32.totalorder %s15, 3
    %p38 = por %p36, %p37
    %p40 = scmp.ne.s32.totalorder %s23, %s39
    %p41 = scmp.eq.s32.totalorder %s15, 0
    %p42 = por %p40, %p41
    %s44 = sadd.s32 %s43, 1
    %p47 = scmp.eq.s32.totalorder %s9, 3
    %p48 = scmp.ne.s32.totalorder %s43, %s45
    %p49 = scmp.eq.s32.totalorder %s9, 0
    %p50 = por %p48, %p49
    %p51 = scmp.ne.s32.totalorder %s43, %s45
    %p52 = scmp.eq.s32.totalorder %s14, 3
    %p53 = por %p51, %p52
    %p54 = scmp.ne.s32.totalorder %s45, %s46
    %p55 = scmp.eq.s32.totalorder %s14, 0
    %p56 = por %p54, %p55
    %p57 = scmp.ne.s32.totalorder %s45, %s46
    %p58 = scmp.eq.s32.totalorder %s15, 3
    %p59 = por %p57, %p58
    %p61 = scmp.ne.s32.totalorder %s46, %s60
    %p62 = scmp.eq.s32.totalorder %s15, 0
    %p63 = por %p61, %p62
    %s65 = sadd.s32 %s64, 1
    %p68 = scmp.eq.s32.totalorder %s9, 3
    %p69 = scmp.ne.s32.totalorder %s64, %s66
    %p70 = scmp.eq.s32.totalorder %s9, 0
    %p71 = por %p69, %p70
    %p72 = scmp.ne.s32.totalorder %s64, %s66
    %p73 = scmp.eq.s32.totalorder %s14, 3
    %p74 = por %p72, %p73
    %p75 = scmp.ne.s32.totalorder %s66, %s67
    %p76 = scmp.eq.s32.totalorder %s14, 0
    %p77 = por %p75, %p76
    %p78 = scmp.ne.s32.totalorder %s66, %s67
    %p79 = scmp.eq.s32.totalorder %s15, 3
    %p80 = por %p78, %p79
    %p82 = scmp.ne.s32.totalorder %s67, %s81
    %p83 = scmp.eq.s32.totalorder %s15, 0
    %p84 = por %p82, %p83
    %s85 = ssub.s32 %s9, %s16
    %p86 = scmp.eq.s32.totalorder %s85, 0
    %s88 = sadd.s32 %s87, 1
    %s89 = scalar_select %p86, %s87, %s88
    %p92 = pneg %p86
    %p93 = scmp.eq.s32.totalorder %s9, 3
    %p94 = por %p92, %p93
    %p95 = scmp.ne.s32.totalorder %s87, %s90
    %p96 = scmp.eq.s32.totalorder %s9, 0
    %p97 = por %p95, %p96
    %p98 = scmp.ne.s32.totalorder %s87, %s90
    %p99 = scmp.eq.s32.totalorder %s14, 3
    %p100 = por %p98, %p99
    %p101 = scmp.ne.s32.totalorder %s90, %s91
    %p102 = scmp.eq.s32.totalorder %s14, 0
    %p103 = por %p101, %p102
    %p104 = scmp.ne.s32.totalorder %s90, %s91
    %p105 = scmp.eq.s32.totalorder %s15, 3
    %p106 = por %p104, %p105
    %p108 = scmp.ne.s32.totalorder %s91, %s107
    %p109 = scmp.eq.s32.totalorder %s15, 0
    %p110 = por %p108, %p109
    %p111 = scmp.le.s32.totalorder 1, %s9
    %p112 = scmp.lt.s32.totalorder %s9, 5
    %p113 = pnand %p111, %p112
    %p114 = pneg %p113
    // Predicated region
    $region9: #{resnet_encoder_forward.5} parent=5 // pred_check
      _
    $region10: #{resnet_encoder_forward.5} parent=5 // pred_check_branch
      %116 = sbr.rel (%p113) target = $region12
    $region11: #{resnet_encoder_forward.5} parent=5 // pred_region
      %s117 = ssub.s32 %s9, 1
      // Predicated region
      $region13: #{resnet_encoder_forward.5} parent=11 // pred_check
        %p118 = pneg %p56
      $region14: #{resnet_encoder_forward.5} parent=11 // pred_check_branch
        %120 = sbr.rel (%p118) target = $region16
      $region15: #{resnet_encoder_forward.5} parent=11 // pred_region
        _
      $region16: #{resnet_encoder_forward.5} parent=11 // pred_fallthru
        _
      // Predicated region
      $region17: #{resnet_encoder_forward.5} parent=11 // pred_check
        %p121 = pneg %p77
      $region18: #{resnet_encoder_forward.5} parent=11 // pred_check_branch
        %123 = sbr.rel (%p121) target = $region20
      $region19: #{resnet_encoder_forward.5} parent=11 // pred_region
        _
      $region20: #{resnet_encoder_forward.5} parent=11 // pred_fallthru
        _
    $region12: #{resnet_encoder_forward.5} parent=5 // pred_fallthru
      _
    %p124 = scmp.lt.s32.totalorder %s9, 4
    // Predicated region
    $region21: #{resnet_encoder_forward.5} parent=5 // pred_check
      %p125 = pneg %p124
    $region22: #{resnet_encoder_forward.5} parent=5 // pred_check_branch
      %127 = sbr.rel (%p125) target = $region24
    $region23: #{resnet_encoder_forward.5} parent=5 // pred_region
      // Predicated region
      $region25: #{resnet_encoder_forward.5} parent=23 // pred_check
        %p128 = pneg %p29
      $region26: #{resnet_encoder_forward.5} parent=23 // pred_check_branch
        %130 = sbr.rel (%p128) target = $region28
      $region27: #{resnet_encoder_forward.5} parent=23 // pred_region
        %p131 = scmp.lt.s32.totalorder %s9, 3
        %s132 = scalar_select %p131, %s9, 3
        %s133 = smul.addr %s132, 8
        %s134 = smul.addr %s133, 4
        %s135 = scalar_lea.vmem %s0, %s134
      $region28: #{resnet_encoder_forward.5} parent=23 // pred_fallthru
        _
    $region24: #{resnet_encoder_forward.5} parent=5 // pred_fallthru
      _
    %p136 = scmp.le.s32.totalorder 1, %s9
    %p137 = scmp.lt.s32.totalorder %s9, 5
    %p138 = pnand %p136, %p137
    %p139 = pneg %p138
    // Predicated region
    $region29: #{resnet_encoder_forward.5} parent=5 // pred_check
      _
    $region30: #{resnet_encoder_forward.5} parent=5 // pred_check_branch
      %141 = sbr.rel (%p138) target = $region32
    $region31: #{resnet_encoder_forward.5} parent=5 // pred_region
      %s142 = ssub.s32 %s9, 1
      %p143 = scmp.lt.s32.totalorder %s14, 3
      %s144 = scalar_select %p143, %s14, 3
      %s145 = smul.addr %s144, 8
      %s146 = smul.addr %s145, 4
      %s147 = scalar_lea.vmem %s0, %s146
      %p148 = pneg %p35
      %p149 = pneg %p32
      %p150 = pneg %p56
      %p151 = pneg %p53
      %p152 = pneg %p77
      %p153 = pneg %p74
      %p154 = pneg %p103
      %p155 = pneg %p100
      %p156 = scmp.lt.s32.totalorder %s14, 3
      %s157 = scalar_select %p156, %s14, 3
      %s158 = smul.addr %s157, 8
      %s159 = smul.addr %s158, 4
      %s160 = scalar_lea.vmem %s3, %s159
      %p161 = scmp.lt.s32.totalorder %s14, 3
      %s162 = scalar_select %p161, %s14, 3
      %s163 = smul.addr %s162, 8
      %s164 = smul.addr %s163, 4
      %s165 = scalar_lea.vmem %s0, %s164
      %p166 = scmp.lt.s32.totalorder %s14, 3
      %s167 = scalar_select %p166, %s14, 3
      %s168 = smul.addr %s167, 8
      %s169 = smul.addr %s168, 4
      %s170 = scalar_lea.vmem %s3, %s169
      %v172 = vld [vmem:[%s165] sm:$0xf]
      %v173 = vld [vmem:[%s165 + $0x4] sm:$0xf]
      %v174 = vld [vmem:[%s165 + $0x8] sm:$0xf]
      %v175 = vld [vmem:[%s165 + $0xc] sm:$0xf]
      %v176 = vld [vmem:[%s165 + $0x10] sm:$0xf]
      %v177 = vld [vmem:[%s165 + $0x14] sm:$0xf]
      %v178 = vld [vmem:[%s165 + $0x18] sm:$0xf]
      %v179 = vld [vmem:[%s165 + $0x1c] sm:$0xf]
      %v180 = vld [vmem:[%s1] sm:$0xf]
      %v181 = vld [vmem:[%s1 + $0x4] sm:$0xf]
      %v182 = vld [vmem:[%s1 + $0x8] sm:$0xf]
      %v183 = vld [vmem:[%s1 + $0xc] sm:$0x3]
      %v184 = vld [vmem:[%s2] sm:$0x1]
      %v186 = vperm.slane %v184, 0
      %v196 = vunpack.c.l.b16 %v172
      %v197 = vunpack.c.l.b16 %v173
      %v198 = vunpack.c.l.b16 %v174
      %v199 = vunpack.c.l.b16 %v175
      %v200 = vunpack.c.l.b16 %v176
      %v201 = vunpack.c.l.b16 %v177
      %v202 = vunpack.c.l.b16 %v178
      %v203 = vunpack.c.l.b16 %v179
      %v204 = vpack.c.b16 %v197, %v196
      %v205 = vpack.c.b16 %v199, %v198
      %v206 = vpack.c.b16 %v201, %v200
      %v207 = vpack.c.b16 %v203, %v202
      %v212 = vunpack.c.l.b16 %v180
      %v213 = vunpack.c.l.b16 %v181
      %v214 = vunpack.c.l.b16 %v182
      %v215 = vunpack.c.l.b16 %v183
      %v216 = vpack.c.b16 %v213, %v212
      %v217 = vpack.c.b16 %v215, %v214
      %vm219 = vcmask 220160
      %v221 = vsel %vm219, %v204, 0
      %v224 = vsel %vm219, %v205, 0
      %v227 = vsel %vm219, %v206, 0
      %v230 = vsel %vm219, %v207, 0
      %vm232 = vcmask 1044480
      %vm233 = vcmask 1045504
      %v234 = vsel %vm232, 4294967295, 65535
      %v235 = vsel %vm233, %v234, 0
      %v237 = vand.u32 %v217, %v235
      %239 = vmatpush.bf16.msra.mxu0 0
      %240 = vmatpush.bf16.msra.mxu0 0
      %241 = vmatpush.bf16.msra.mxu0 0
      %242 = vmatpush.bf16.msra.mxu0 0
      %243 = vmatpush.bf16.msra.mxu0 0
      %244 = vmatpush.bf16.msra.mxu0 0
      %245 = vmatpush.bf16.msra.mxu0 %v237
      %246 = vmatpush.bf16.msra.mxu0 %v216
      %247 = vmatmul.bf16.gmra.mxu0 %v221
      %v248 = vpop.f32.mrf.mxu0
      %v249 = vadd.f32 %v186, %v248
      %v250 = vpop.f32.mrf.mxu0
      %v251 = vadd.f32 %v186, %v250
      %252 = vmatmul.bf16.gmra.mxu0 %v224
      %v253 = vpop.f32.mrf.mxu0
      %v254 = vadd.f32 %v186, %v253
      %v255 = vpop.f32.mrf.mxu0
      %v256 = vadd.f32 %v186, %v255
      %257 = vmatmul.bf16.gmra.mxu0 %v227
      %v258 = vpop.f32.mrf.mxu0
      %v259 = vadd.f32 %v186, %v258
      %v260 = vpop.f32.mrf.mxu0
      %v261 = vadd.f32 %v186, %v260
      %262 = vmatmul.bf16.gmra.mxu0 %v230
      %v263 = vpop.f32.mrf.mxu0
      %v264 = vadd.f32 %v186, %v263
      %v265 = vpop.f32.mrf.mxu0
      %v266 = vadd.f32 %v186, %v265
      %267 = vdwg.mxu0
      %v268 = vmax.f32 %v249, 0.0
      %v269 = vmax.f32 %v251, 0.0
      %v270 = vmax.f32 %v254, 0.0
      %v271 = vmax.f32 %v256, 0.0
      %v272 = vmax.f32 %v259, 0.0
      %v273 = vmax.f32 %v261, 0.0
      %v274 = vmax.f32 %v264, 0.0
      %v275 = vmax.f32 %v266, 0.0
      %v276 = vpack.c.bf16 %v268, %v268
      %v277 = vpack.c.bf16 %v269, %v269
      %v278 = vpack.c.bf16 %v270, %v270
      %v279 = vpack.c.bf16 %v271, %v271
      %v280 = vpack.c.bf16 %v272, %v272
      %v281 = vpack.c.bf16 %v273, %v273
      %v282 = vpack.c.bf16 %v274, %v274
      %v283 = vpack.c.bf16 %v275, %v275
      %284 = vst [vmem:[%s170] sm:$0xf] %v276
      %285 = vst [vmem:[%s170 + $0x4] sm:$0xf] %v277
      %286 = vst [vmem:[%s170 + $0x8] sm:$0xf] %v278
      %287 = vst [vmem:[%s170 + $0xc] sm:$0xf] %v279
      %288 = vst [vmem:[%s170 + $0x10] sm:$0xf] %v280
      %289 = vst [vmem:[%s170 + $0x14] sm:$0xf] %v281
      %290 = vst [vmem:[%s170 + $0x18] sm:$0xf] %v282
      %291 = vst [vmem:[%s170 + $0x1c] sm:$0xf] %v283
      %p292 = scmp.lt.s32.totalorder %s14, 3
      %s293 = scalar_select %p292, %s14, 3
      %s294 = smul.addr %s293, 8
      %s295 = smul.addr %s294, 4
      %s296 = scalar_lea.vmem %s3, %s295
      // Predicated region
      $region33: #{resnet_encoder_forward.5} parent=31 // pred_check
        %p297 = pneg %p100
      $region34: #{resnet_encoder_forward.5} parent=31 // pred_check_branch
        %299 = sbr.rel (%p297) target = $region36
      $region35: #{resnet_encoder_forward.5} parent=31 // pred_region
        _
      $region36: #{resnet_encoder_forward.5} parent=31 // pred_fallthru
        _
    $region32: #{resnet_encoder_forward.5} parent=5 // pred_fallthru
      _
    %p300 = scmp.le.s32.totalorder 2, %s9
    // Predicated region
    $region37: #{resnet_encoder_forward.5} parent=5 // pred_check
      %p301 = pneg %p300
    $region38: #{resnet_encoder_forward.5} parent=5 // pred_check_branch
      %303 = sbr.rel (%p301) target = $region40
    $region39: #{resnet_encoder_forward.5} parent=5 // pred_region
      %s304 = ssub.s32 %s9, 2
      // Predicated region
      $region41: #{resnet_encoder_forward.5} parent=39 // pred_check
        %p305 = pneg %p106
      $region42: #{resnet_encoder_forward.5} parent=39 // pred_check_branch
        %307 = sbr.rel (%p305) target = $region44
      $region43: #{resnet_encoder_forward.5} parent=39 // pred_region
        %p308 = scmp.lt.s32.totalorder %s15, 3
        %s309 = scalar_select %p308, %s15, 3
        %s310 = smul.addr %s309, 8
        %s311 = smul.addr %s310, 4
        %s312 = scalar_lea.vmem %s3, %s311
      $region44: #{resnet_encoder_forward.5} parent=39 // pred_fallthru
        _
    $region40: #{resnet_encoder_forward.5} parent=5 // pred_fallthru
      _
  $region6: #{resnet_encoder_forward.5} parent=0 // loop_footer
    %s13 = sadd.s32 1, %s9
  $region7: #{resnet_encoder_forward.5} parent=0 // loop_footer_branch
    %8 = sbr.rel target = $region3
  $region8: #{resnet_encoder_forward.5} parent=0 // loop_exit
    _

// kernel: resnet_encoder_forward.6
$region0: #{resnet_encoder_forward.6}
  #allocation0 [shape = 'u32[]', space=smem, size = 0x4, offset = 0x4, fixed_abs, tag = 'smem constant byte address 0x4 - core index']
  #allocation1 [shape = 'u32[72,128]{1,0:T(1,128)}', space=vmem, size = 0x9000, scoped, tag = 'internal scratch']
  %s0 = inlined_call_operand.vmem [shape: bf16[4,64,128], index: 0, kind: input, shape index: {}]
  %s1 = inlined_call_operand.vmem [shape: bf16[128,128], index: 1, kind: input, shape index: {}]
  %s2 = inlined_call_operand.vmem [shape: f32[1,128], index: 2, kind: input, shape index: {}]
  %s3 = inlined_call_operand.vmem [shape: bf16[4,64,128], index: 3, kind: output, shape index: {}]
  %s4 = sld [smem:[#allocation0]]
  $region45: #{resnet_encoder_forward.6} parent=0
    _
  %s6 = ssub.s32 1, %s4
  %s7 = scalar_select 0, %s6, %s4
  loop: start=0, step=1, limit=6
  $region2: #{resnet_encoder_forward.6} parent=0 // loop_pre_header
    _
  $region3: #{resnet_encoder_forward.6} parent=0 // loop_header
    %s9 = sphi 0, %s13
    %p10 = scmp.ge.s32.totalorder %s9, 6
    %s19 = sphi 0, %s21
    %s22 = sphi 0, %s19
    %s23 = sphi 0, %s22
    %s39 = sphi 0, %s23
    %s43 = sphi 0, %s43
    %s45 = sphi 0, %s43
    %s46 = sphi 0, %s45
    %s60 = sphi 0, %s46
    %s64 = sphi 0, %s64
    %s66 = sphi 0, %s64
    %s67 = sphi 0, %s66
    %s81 = sphi 0, %s67
    %s87 = sphi 0, %s89
    %s90 = sphi 0, %s87
    %s91 = sphi 0, %s90
    %s107 = sphi 0, %s91
  $region4: #{resnet_encoder_forward.6} parent=0 // loop_header_branch
    %12 = sbr.rel (%p10) target = $region8
  $region5: #{resnet_encoder_forward.6} parent=0 // loop_body
    %s14 = ssub.s32 %s9, 1
    %s15 = ssub.s32 %s9, 2
    %s16 = sadd.s32 %s9, 1
    %s17 = ssub.s32 %s9, %s16
    %p18 = scmp.eq.s32.totalorder %s17, 0
    %s20 = sadd.s32 %s19, 1
    %s21 = scalar_select %p18, %s19, %s20
    %p24 = pneg %p18
    %p25 = scmp.eq.s32.totalorder %s9, 3
    %p26 = por %p24, %p25
    %p27 = scmp.ne.s32.totalorder %s19, %s22
    %p28 = scmp.eq.s32.totalorder %s9, 0
    %p29 = por %p27, %p28
    %p30 = scmp.ne.s32.totalorder %s19, %s22
    %p31 = scmp.eq.s32.totalorder %s14, 3
    %p32 = por %p30, %p31
    %p33 = scmp.ne.s32.totalorder %s22, %s23
    %p34 = scmp.eq.s32.totalorder %s14, 0
    %p35 = por %p33, %p34
    %p36 = scmp.ne.s32.totalorder %s22, %s23
    %p37 = scmp.eq.s32.totalorder %s15, 3
    %p38 = por %p36, %p37
    %p40 = scmp.ne.s32.totalorder %s23, %s39
    %p41 = scmp.eq.s32.totalorder %s15, 0
    %p42 = por %p40, %p41
    %s44 = sadd.s32 %s43, 1
    %p47 = scmp.eq.s32.totalorder %s9, 3
    %p48 = scmp.ne.s32.totalorder %s43, %s45
    %p49 = scmp.eq.s32.totalorder %s9, 0
    %p50 = por %p48, %p49
    %p51 = scmp.ne.s32.totalorder %s43, %s45
    %p52 = scmp.eq.s32.totalorder %s14, 3
    %p53 = por %p51, %p52
    %p54 = scmp.ne.s32.totalorder %s45, %s46
    %p55 = scmp.eq.s32.totalorder %s14, 0
    %p56 = por %p54, %p55
    %p57 = scmp.ne.s32.totalorder %s45, %s46
    %p58 = scmp.eq.s32.totalorder %s15, 3
    %p59 = por %p57, %p58
    %p61 = scmp.ne.s32.totalorder %s46, %s60
    %p62 = scmp.eq.s32.totalorder %s15, 0
    %p63 = por %p61, %p62
    %s65 = sadd.s32 %s64, 1
    %p68 = scmp.eq.s32.totalorder %s9, 3
    %p69 = scmp.ne.s32.totalorder %s64, %s66
    %p70 = scmp.eq.s32.totalorder %s9, 0
    %p71 = por %p69, %p70
    %p72 = scmp.ne.s32.totalorder %s64, %s66
    %p73 = scmp.eq.s32.totalorder %s14, 3
    %p74 = por %p72, %p73
    %p75 = scmp.ne.s32.totalorder %s66, %s67
    %p76 = scmp.eq.s32.totalorder %s14, 0
    %p77 = por %p75, %p76
    %p78 = scmp.ne.s32.totalorder %s66, %s67
    %p79 = scmp.eq.s32.totalorder %s15, 3
    %p80 = por %p78, %p79
    %p82 = scmp.ne.s32.totalorder %s67, %s81
    %p83 = scmp.eq.s32.totalorder %s15, 0
    %p84 = por %p82, %p83
    %s85 = ssub.s32 %s9, %s16
    %p86 = scmp.eq.s32.totalorder %s85, 0
    %s88 = sadd.s32 %s87, 1
    %s89 = scalar_select %p86, %s87, %s88
    %p92 = pneg %p86
    %p93 = scmp.eq.s32.totalorder %s9, 3
    %p94 = por %p92, %p93
    %p95 = scmp.ne.s32.totalorder %s87, %s90
    %p96 = scmp.eq.s32.totalorder %s9, 0
    %p97 = por %p95, %p96
    %p98 = scmp.ne.s32.totalorder %s87, %s90
    %p99 = scmp.eq.s32.totalorder %s14, 3
    %p100 = por %p98, %p99
    %p101 = scmp.ne.s32.totalorder %s90, %s91
    %p102 = scmp.eq.s32.totalorder %s14, 0
    %p103 = por %p101, %p102
    %p104 = scmp.ne.s32.totalorder %s90, %s91
    %p105 = scmp.eq.s32.totalorder %s15, 3
    %p106 = por %p104, %p105
    %p108 = scmp.ne.s32.totalorder %s91, %s107
    %p109 = scmp.eq.s32.totalorder %s15, 0
    %p110 = por %p108, %p109
    %p111 = scmp.le.s32.totalorder 1, %s9
    %p112 = scmp.lt.s32.totalorder %s9, 5
    %p113 = pnand %p111, %p112
    %p114 = pneg %p113
    // Predicated region
    $region9: #{resnet_encoder_forward.6} parent=5 // pred_check
      _
    $region10: #{resnet_encoder_forward.6} parent=5 // pred_check_branch
      %116 = sbr.rel (%p113) target = $region12
    $region11: #{resnet_encoder_forward.6} parent=5 // pred_region
      %s117 = ssub.s32 %s9, 1
      // Predicated region
      $region13: #{resnet_encoder_forward.6} parent=11 // pred_check
        %p118 = pneg %p56
      $region14: #{resnet_encoder_forward.6} parent=11 // pred_check_branch
        %120 = sbr.rel (%p118) target = $region16
      $region15: #{resnet_encoder_forward.6} parent=11 // pred_region
        _
      $region16: #{resnet_encoder_forward.6} parent=11 // pred_fallthru
        _
      // Predicated region
      $region17: #{resnet_encoder_forward.6} parent=11 // pred_check
        %p121 = pneg %p77
      $region18: #{resnet_encoder_forward.6} parent=11 // pred_check_branch
        %123 = sbr.rel (%p121) target = $region20
      $region19: #{resnet_encoder_forward.6} parent=11 // pred_region
        _
      $region20: #{resnet_encoder_forward.6} parent=11 // pred_fallthru
        _
    $region12: #{resnet_encoder_forward.6} parent=5 // pred_fallthru
      _
    %p124 = scmp.lt.s32.totalorder %s9, 4
    // Predicated region
    $region21: #{resnet_encoder_forward.6} parent=5 // pred_check
      %p125 = pneg %p124
    $region22: #{resnet_encoder_forward.6} parent=5 // pred_check_branch
      %127 = sbr.rel (%p125) target = $region24
    $region23: #{resnet_encoder_forward.6} parent=5 // pred_region
      // Predicated region
      $region25: #{resnet_encoder_forward.6} parent=23 // pred_check
        %p128 = pneg %p29
      $region26: #{resnet_encoder_forward.6} parent=23 // pred_check_branch
        %130 = sbr.rel (%p128) target = $region28
      $region27: #{resnet_encoder_forward.6} parent=23 // pred_region
        %p131 = scmp.lt.s32.totalorder %s9, 3
        %s132 = scalar_select %p131, %s9, 3
        %s133 = smul.addr %s132, 8
        %s134 = smul.addr %s133, 4
        %s135 = scalar_lea.vmem %s0, %s134
      $region28: #{resnet_encoder_forward.6} parent=23 // pred_fallthru
        _
    $region24: #{resnet_encoder_forward.6} parent=5 // pred_fallthru
      _
    %p136 = scmp.le.s32.totalorder 1, %s9
    %p137 = scmp.lt.s32.totalorder %s9, 5
    %p138 = pnand %p136, %p137
    %p139 = pneg %p138
    // Predicated region
    $region29: #{resnet_encoder_forward.6} parent=5 // pred_check
      _
    $region30: #{resnet_encoder_forward.6} parent=5 // pred_check_branch
      %141 = sbr.rel (%p138) target = $region32
    $region31: #{resnet_encoder_forward.6} parent=5 // pred_region
      %s142 = ssub.s32 %s9, 1
      %p143 = scmp.lt.s32.totalorder %s14, 3
      %s144 = scalar_select %p143, %s14, 3
      %s145 = smul.addr %s144, 8
      %s146 = smul.addr %s145, 4
      %s147 = scalar_lea.vmem %s0, %s146
      %p148 = pneg %p35
      %p149 = pneg %p32
      %p150 = pneg %p56
      %p151 = pneg %p53
      %p152 = pneg %p77
      %p153 = pneg %p74
      %p154 = pneg %p103
      %p155 = pneg %p100
      %p156 = scmp.lt.s32.totalorder %s14, 3
      %s157 = scalar_select %p156, %s14, 3
      %s158 = smul.addr %s157, 8
      %s159 = smul.addr %s158, 4
      %s160 = scalar_lea.vmem %s3, %s159
      %p161 = scmp.lt.s32.totalorder %s14, 3
      %s162 = scalar_select %p161, %s14, 3
      %s163 = smul.addr %s162, 8
      %s164 = smul.addr %s163, 4
      %s165 = scalar_lea.vmem %s0, %s164
      %p166 = scmp.lt.s32.totalorder %s14, 3
      %s167 = scalar_select %p166, %s14, 3
      %s168 = smul.addr %s167, 8
      %s169 = smul.addr %s168, 4
      %s170 = scalar_lea.vmem %s3, %s169
      %v171 = vld [vmem:[%s165] sm:$0xf]
      %v172 = vld [vmem:[%s165 + $0x4] sm:$0xf]
      %v173 = vld [vmem:[%s165 + $0x8] sm:$0xf]
      %v174 = vld [vmem:[%s165 + $0xc] sm:$0xf]
      %v175 = vld [vmem:[%s165 + $0x10] sm:$0xf]
      %v176 = vld [vmem:[%s165 + $0x14] sm:$0xf]
      %v177 = vld [vmem:[%s165 + $0x18] sm:$0xf]
      %v178 = vld [vmem:[%s165 + $0x1c] sm:$0xf]
      %v179 = vld [vmem:[%s1] sm:$0xf]
      %v180 = vld [vmem:[%s1 + $0x4] sm:$0xf]
      %v181 = vld [vmem:[%s1 + $0x8] sm:$0xf]
      %v182 = vld [vmem:[%s1 + $0xc] sm:$0xf]
      %v183 = vld [vmem:[%s1 + $0x10] sm:$0xf]
      %v184 = vld [vmem:[%s1 + $0x14] sm:$0xf]
      %v185 = vld [vmem:[%s1 + $0x18] sm:$0xf]
      %v186 = vld [vmem:[%s1 + $0x1c] sm:$0xf]
      %v187 = vld [vmem:[%s1 + $0x20] sm:$0xf]
      %v188 = vld [vmem:[%s1 + $0x24] sm:$0xf]
      %v189 = vld [vmem:[%s1 + $0x28] sm:$0xf]
      %v190 = vld [vmem:[%s1 + $0x2c] sm:$0xf]
      %v191 = vld [vmem:[%s1 + $0x30] sm:$0xf]
      %v192 = vld [vmem:[%s1 + $0x34] sm:$0xf]
      %v193 = vld [vmem:[%s1 + $0x38] sm:$0xf]
      %v194 = vld [vmem:[%s1 + $0x3c] sm:$0xf]
      %v195 = vld [vmem:[%s2] sm:$0x1]
      %v197 = vperm.slane %v195, 0
      %v207 = vunpack.c.l.b16 %v171
      %v208 = vunpack.c.l.b16 %v172
      %v209 = vunpack.c.l.b16 %v173
      %v210 = vunpack.c.l.b16 %v174
      %v211 = vunpack.c.l.b16 %v175
      %v212 = vunpack.c.l.b16 %v176
      %v213 = vunpack.c.l.b16 %v177
      %v214 = vunpack.c.l.b16 %v178
      %v215 = vpack.c.b16 %v208, %v207
      %v216 = vpack.c.b16 %v210, %v209
      %v217 = vpack.c.b16 %v212, %v211
      %v218 = vpack.c.b16 %v214, %v213
      %v239 = vunpack.c.l.b16 %v179
      %v240 = vunpack.c.l.b16 %v180
      %v241 = vunpack.c.l.b16 %v181
      %v242 = vunpack.c.l.b16 %v182
      %v243 = vunpack.c.l.b16 %v183
      %v244 = vunpack.c.l.b16 %v184
      %v245 = vunpack.c.l.b16 %v185
      %v246 = vunpack.c.l.b16 %v186
      %v247 = vunpack.c.l.b16 %v187
      %v248 = vunpack.c.l.b16 %v188
      %v249 = vunpack.c.l.b16 %v189
      %v250 = vunpack.c.l.b16 %v190
      %v251 = vunpack.c.l.b16 %v191
      %v252 = vunpack.c.l.b16 %v192
      %v253 = vunpack.c.l.b16 %v193
      %v254 = vunpack.c.l.b16 %v194
      %v255 = vpack.c.b16 %v240, %v239
      %v256 = vpack.c.b16 %v242, %v241
      %v257 = vpack.c.b16 %v244, %v243
      %v258 = vpack.c.b16 %v246, %v245
      %v259 = vpack.c.b16 %v248, %v247
      %v260 = vpack.c.b16 %v250, %v249
      %v261 = vpack.c.b16 %v252, %v251
      %v262 = vpack.c.b16 %v254, %v253
      %271 = vmatpush.bf16.msra.mxu0 %v262
      %272 = vmatpush.bf16.msra.mxu0 %v261
      %273 = vmatpush.bf16.msra.mxu0 %v260
      %274 = vmatpush.bf16.msra.mxu0 %v259
      %275 = vmatpush.bf16.msra.mxu0 %v258
      %276 = vmatpush.bf16.msra.mxu0 %v257
      %277 = vmatpush.bf16.msra.mxu0 %v256
      %278 = vmatpush.bf16.msra.mxu0 %v255
      %279 = vmatmul.bf16.gmra.mxu0 %v215
      %v280 = vpop.f32.mrf.mxu0
      %v281 = vadd.f32 %v197, %v280
      %v282 = vpop.f32.mrf.mxu0
      %v283 = vadd.f32 %v197, %v282
      %284 = vmatmul.bf16.gmra.mxu0 %v216
      %v285 = vpop.f32.mrf.mxu0
      %v286 = vadd.f32 %v197, %v285
      %v287 = vpop.f32.mrf.mxu0
      %v288 = vadd.f32 %v197, %v287
      %289 = vmatmul.bf16.gmra.mxu0 %v217
      %v290 = vpop.f32.mrf.mxu0
      %v291 = vadd.f32 %v197, %v290
      %v292 = vpop.f32.mrf.mxu0
      %v293 = vadd.f32 %v197, %v292
      %294 = vmatmul.bf16.gmra.mxu0 %v218
      %v295 = vpop.f32.mrf.mxu0
      %v296 = vadd.f32 %v197, %v295
      %v297 = vpop.f32.mrf.mxu0
      %v298 = vadd.f32 %v197, %v297
      %299 = vdwg.mxu0
      %v300 = vmax.f32 %v281, 0.0
      %v301 = vmax.f32 %v283, 0.0
      %v302 = vmax.f32 %v286, 0.0
      %v303 = vmax.f32 %v288, 0.0
      %v304 = vmax.f32 %v291, 0.0
      %v305 = vmax.f32 %v293, 0.0
      %v306 = vmax.f32 %v296, 0.0
      %v307 = vmax.f32 %v298, 0.0
      %v308 = vpack.c.bf16 %v300, %v300
      %v309 = vpack.c.bf16 %v301, %v301
      %v310 = vpack.c.bf16 %v302, %v302
      %v311 = vpack.c.bf16 %v303, %v303
      %v312 = vpack.c.bf16 %v304, %v304
      %v313 = vpack.c.bf16 %v305, %v305
      %v314 = vpack.c.bf16 %v306, %v306
      %v315 = vpack.c.bf16 %v307, %v307
      %316 = vst [vmem:[%s170] sm:$0xf] %v308
      %317 = vst [vmem:[%s170 + $0x4] sm:$0xf] %v309
      %318 = vst [vmem:[%s170 + $0x8] sm:$0xf] %v310
      %319 = vst [vmem:[%s170 + $0xc] sm:$0xf] %v311
      %320 = vst [vmem:[%s170 + $0x10] sm:$0xf] %v312
      %321 = vst [vmem:[%s170 + $0x14] sm:$0xf] %v313
      %322 = vst [vmem:[%s170 + $0x18] sm:$0xf] %v314
      %323 = vst [vmem:[%s170 + $0x1c] sm:$0xf] %v315
      %p324 = scmp.lt.s32.totalorder %s14, 3
      %s325 = scalar_select %p324, %s14, 3
      %s326 = smul.addr %s325, 8
      %s327 = smul.addr %s326, 4
      %s328 = scalar_lea.vmem %s3, %s327
      // Predicated region
      $region33: #{resnet_encoder_forward.6} parent=31 // pred_check
        %p329 = pneg %p100
      $region34: #{resnet_encoder_forward.6} parent=31 // pred_check_branch
        %331 = sbr.rel (%p329) target = $region36
      $region35: #{resnet_encoder_forward.6} parent=31 // pred_region
        _
      $region36: #{resnet_encoder_forward.6} parent=31 // pred_fallthru
        _
    $region32: #{resnet_encoder_forward.6} parent=5 // pred_fallthru
      _
    %p332 = scmp.le.s32.totalorder 2, %s9
    // Predicated region
    $region37: #{resnet_encoder_forward.6} parent=5 // pred_check
      %p333 = pneg %p332
    $region38: #{resnet_encoder_forward.6} parent=5 // pred_check_branch
      %335 = sbr.rel (%p333) target = $region40
    $region39: #{resnet_encoder_forward.6} parent=5 // pred_region
      %s336 = ssub.s32 %s9, 2
      // Predicated region
      $region41: #{resnet_encoder_forward.6} parent=39 // pred_check
        %p337 = pneg %p106
      $region42: #{resnet_encoder_forward.6} parent=39 // pred_check_branch
        %339 = sbr.rel (%p337) target = $region44
      $region43: #{resnet_encoder_forward.6} parent=39 // pred_region
        %p340 = scmp.lt.s32.totalorder %s15, 3
        %s341 = scalar_select %p340, %s15, 3
        %s342 = smul.addr %s341, 8
        %s343 = smul.addr %s342, 4
        %s344 = scalar_lea.vmem %s3, %s343
      $region44: #{resnet_encoder_forward.6} parent=39 // pred_fallthru
        _
    $region40: #{resnet_encoder_forward.6} parent=5 // pred_fallthru
      _
  $region6: #{resnet_encoder_forward.6} parent=0 // loop_footer
    %s13 = sadd.s32 1, %s9
  $region7: #{resnet_encoder_forward.6} parent=0 // loop_footer_branch
    %8 = sbr.rel target = $region3
  $region8: #{resnet_encoder_forward.6} parent=0 // loop_exit
    _

// kernel: resnet_encoder_forward.9
$region0: #{resnet_encoder_forward.9}
  #allocation0 [shape = 'u32[]', space=smem, size = 0x4, offset = 0x4, fixed_abs, tag = 'smem constant byte address 0x4 - core index']
  #allocation1 [shape = 'u32[72,128]{1,0:T(1,128)}', space=vmem, size = 0x9000, scoped, tag = 'internal scratch']
  %s0 = inlined_call_operand.vmem [shape: f32[2,2,128], index: 0, kind: input, shape index: {}]
  %s1 = inlined_call_operand.vmem [shape: f32[128,128], index: 1, kind: input, shape index: {}]
  %s2 = inlined_call_operand.vmem [shape: f32[1,128], index: 2, kind: input, shape index: {}]
  %s3 = inlined_call_operand.hbm [shape: f32[2,128], index: 3, kind: output, shape index: {}]
  %s4 = sld [smem:[#allocation0]]
  $region22: #{resnet_encoder_forward.9} parent=0
    _
  %s6 = ssub.s32 1, %s4
  %s7 = scalar_select 0, %s6, %s4
  $region1: #{resnet_encoder_forward.9} parent=0
    #allocation2 [shape = 'u8[1024]{0}', space=vmem, size = 0x400, scoped, tag = 'output window, operand 0, single buffered']
    #allocation3 [shape = 's32[1]{0}', space=sflag, size = 0x4, scoped, tag = 'scoped memory for resnet_encoder_forward.9']
    %8 = vsyncpa [#allocation3], 0
    // Predicated region
    $region2: #{resnet_encoder_forward.9} parent=1 // pred_check
      _
    $region3: #{resnet_encoder_forward.9} parent=1 // pred_check_branch
      %10 = sbr.rel (0) target = $region5
    $region4: #{resnet_encoder_forward.9} parent=1 // pred_region
      _
    $region5: #{resnet_encoder_forward.9} parent=1 // pred_fallthru
      _
    // Predicated region
    $region6: #{resnet_encoder_forward.9} parent=1 // pred_check
      _
    $region7: #{resnet_encoder_forward.9} parent=1 // pred_check_branch
      %12 = sbr.rel (0) target = $region9
    $region8: #{resnet_encoder_forward.9} parent=1 // pred_region
      _
    $region9: #{resnet_encoder_forward.9} parent=1 // pred_fallthru
      _
    // Predicated region
    $region10: #{resnet_encoder_forward.9} parent=1 // pred_check
      _
    $region11: #{resnet_encoder_forward.9} parent=1 // pred_check_branch
      %14 = sbr.rel (0) target = $region13
    $region12: #{resnet_encoder_forward.9} parent=1 // pred_region
      _
    $region13: #{resnet_encoder_forward.9} parent=1 // pred_fallthru
      _
    %v15 = vld [vmem:[%s0] sm:$0x3]
    %v16 = vld [vmem:[%s0 + $0x2] sm:$0x3]
    %vm17 = vcmask 1041408
    %v18 = vsel %vm17, %v15, 0.0
    %v19 = vrot.slane %v18, 4
    %v20 = vadd.f32 %v18, %v19
    %v21 = vrot.slane %v20, 2
    %v22 = vadd.f32 %v20, %v21
    %v23 = vrot.slane %v22, 1
    %v24 = vadd.f32 %v22, %v23
    %v25 = vsel %vm17, %v16, 0.0
    %v26 = vrot.slane %v25, 4
    %v27 = vadd.f32 %v25, %v26
    %v28 = vrot.slane %v27, 2
    %v29 = vadd.f32 %v27, %v28
    %v30 = vrot.slane %v29, 1
    %v31 = vadd.f32 %v29, %v30
    %v32 = vrcp.pop 2.0
    %v33 = vmul.f32 2.0, %v32
    %v34 = vsub.f32 1.0, %v33
    %v35 = vmul.f32 %v32, %v34
    %v36 = vadd.f32 %v32, %v35
    %vm37 = vweird.f32 %v32
    %v38 = vsel %vm37, %v32, %v36
    %v39 = vmul.f32 %v24, %v38
    %v40 = vmul.f32 %v31, %v38
    %v41 = vld [vmem:[%s1] sm:$0xff]
    %v42 = vld [vmem:[%s1 + $0x8] sm:$0xff]
    %v43 = vld [vmem:[%s1 + $0x10] sm:$0xff]
    %v44 = vld [vmem:[%s1 + $0x18] sm:$0xff]
    %v45 = vld [vmem:[%s1 + $0x20] sm:$0xff]
    %v46 = vld [vmem:[%s1 + $0x28] sm:$0xff]
    %v47 = vld [vmem:[%s1 + $0x30] sm:$0xff]
    %v48 = vld [vmem:[%s1 + $0x38] sm:$0xff]
    %v49 = vld [vmem:[%s1 + $0x40] sm:$0xff]
    %v50 = vld [vmem:[%s1 + $0x48] sm:$0xff]
    %v51 = vld [vmem:[%s1 + $0x50] sm:$0xff]
    %v52 = vld [vmem:[%s1 + $0x58] sm:$0xff]
    %v53 = vld [vmem:[%s1 + $0x60] sm:$0xff]
    %v54 = vld [vmem:[%s1 + $0x68] sm:$0xff]
    %v55 = vld [vmem:[%s1 + $0x70] sm:$0xff]
    %v56 = vld [vmem:[%s1 + $0x78] sm:$0xff]
    %v57 = vld [vmem:[%s2] sm:$0x1]
    %v59 = vperm.slane %v57, 0
    %vm63 = vcmask 1041409
    %v64 = vsel %vm63, %v40, %v39
    %66 = vmatpush.msra.mxu0 %v56
    %67 = vmatpush.msra.mxu0 %v55
    %68 = vmatpush.msra.mxu0 %v54
    %69 = vmatpush.msra.mxu0 %v53
    %70 = vmatpush.msra.mxu0 %v52
    %71 = vmatpush.msra.mxu0 %v51
    %72 = vmatpush.msra.mxu0 %v50
    %73 = vmatpush.msra.mxu0 %v49
    %74 = vmatpush.msra.mxu0 %v48
    %75 = vmatpush.msra.mxu0 %v47
    %76 = vmatpush.msra.mxu0 %v46
    %77 = vmatpush.msra.mxu0 %v45
    %78 = vmatpush.msra.mxu0 %v44
    %79 = vmatpush.msra.mxu0 %v43
    %80 = vmatpush.msra.mxu0 %v42
    %81 = vmatpush.msra.mxu0 %v41
    %82 = vmatmul.f32.gmra.mxu0 %v64
    %v83 = vpop.f32.mrf.mxu0
    %v84 = vadd.f32 %v59, %v83
    %85 = vdwg.mxu0
    %v86 = vmul.f32 %v84, %v84
    %v87 = vsel %vm17, %v86, 0.0
    %88 = vadd.xlane.f32.xlu0 %v87
    %v89 = vpop.xlane.xlu0 %88
    %v90 = vmax.f32 %v89, 1e-24
    %v91 = vrsqrt.pop %v90
    %v92 = vmul.f32 %v91, %v90
    %v93 = vmul.f32 %v92, %v91
    %v94 = vmul.f32 0.5, %v93
    %v95 = vsub.f32 1.5, %v94
    %v96 = vmul.f32 %v91, %v95
    %vm97 = vweird.f32 %v90
    %vm98 = vweird.f32 %v91
    %vm99 = vmor %vm97, %vm98
    %v100 = vsel %vm99, %v91, %v96
    %v101 = vmul.f32 %v84, %v100
    %102 = vst [vmem:[#allocation2] sm:$0x3] %v101
    // Predicated region
    $region14: #{resnet_encoder_forward.9} parent=1 // pred_check
      _
    $region15: #{resnet_encoder_forward.9} parent=1 // pred_check_branch
      %104 = sbr.rel (0) target = $region17
    $region16: #{resnet_encoder_forward.9} parent=1 // pred_region
      %106 = vsyncadd [#allocation3], 0
      %s108 = sshll.u32 [#allocation2], 4
      %s109 = int_to_ptr.vmem [resolvable:$true] %s108
      %s110 = sshll.u32 %s3, 4
      %s111 = int_to_ptr.hbm [resolvable:$true] %s110
      %113 = dma.vmem_to_hbm [thread:$0]  %s109, 32, %s111, [#allocation3]
    $region17: #{resnet_encoder_forward.9} parent=1 // pred_fallthru
      _
    // Predicated region
    $region18: #{resnet_encoder_forward.9} parent=1 // pred_check
      _
    $region19: #{resnet_encoder_forward.9} parent=1 // pred_check_branch
      %115 = sbr.rel (0) target = $region21
    $region20: #{resnet_encoder_forward.9} parent=1 // pred_region
      %117 = dma.done [#allocation3], 32
    $region21: #{resnet_encoder_forward.9} parent=1 // pred_fallthru
      _
    %118 = vsyncpa [#allocation3], 1

// kernel: resnet_encoder_forward.8
$region0: #{resnet_encoder_forward.8}
  #allocation0 [shape = 'u32[]', space=smem, size = 0x4, offset = 0x4, fixed_abs, tag = 'smem constant byte address 0x4 - core index']
  #allocation1 [shape = 'u32[72,128]{1,0:T(1,128)}', space=vmem, size = 0x9000, scoped, tag = 'internal scratch']
  %s0 = inlined_call_operand.vmem [shape: bf16[4,64,128], index: 0, kind: input, shape index: {}]
  %s1 = inlined_call_operand.vmem [shape: bf16[128,128], index: 1, kind: input, shape index: {}]
  %s2 = inlined_call_operand.vmem [shape: f32[1,128], index: 2, kind: input, shape index: {}]
  %s3 = inlined_call_operand.vmem [shape: bf16[4,64,128], index: 3, kind: input, shape index: {}]
  %s4 = inlined_call_operand.vmem [shape: f32[4,1,128], index: 4, kind: output, shape index: {}]
  %s5 = sld [smem:[#allocation0]]
  $region49: #{resnet_encoder_forward.8} parent=0
    _
  %s7 = ssub.s32 1, %s5
  %s8 = scalar_select 0, %s7, %s5
  loop: start=0, step=1, limit=6
  $region2: #{resnet_encoder_forward.8} parent=0 // loop_pre_header
    _
  $region3: #{resnet_encoder_forward.8} parent=0 // loop_header
    %s10 = sphi 0, %s14
    %p11 = scmp.ge.s32.totalorder %s10, 6
    %s20 = sphi 0, %s22
    %s23 = sphi 0, %s20
    %s24 = sphi 0, %s23
    %s40 = sphi 0, %s24
    %s44 = sphi 0, %s44
    %s46 = sphi 0, %s44
    %s47 = sphi 0, %s46
    %s61 = sphi 0, %s47
    %s65 = sphi 0, %s65
    %s67 = sphi 0, %s65
    %s68 = sphi 0, %s67
    %s82 = sphi 0, %s68
    %s88 = sphi 0, %s90
    %s91 = sphi 0, %s88
    %s92 = sphi 0, %s91
    %s108 = sphi 0, %s92
    %s114 = sphi 0, %s116
    %s117 = sphi 0, %s114
    %s118 = sphi 0, %s117
    %s134 = sphi 0, %s118
  $region4: #{resnet_encoder_forward.8} parent=0 // loop_header_branch
    %13 = sbr.rel (%p11) target = $region8
  $region5: #{resnet_encoder_forward.8} parent=0 // loop_body
    %s15 = ssub.s32 %s10, 1
    %s16 = ssub.s32 %s10, 2
    %s17 = sadd.s32 %s10, 1
    %s18 = ssub.s32 %s10, %s17
    %p19 = scmp.eq.s32.totalorder %s18, 0
    %s21 = sadd.s32 %s20, 1
    %s22 = scalar_select %p19, %s20, %s21
    %p25 = pneg %p19
    %p26 = scmp.eq.s32.totalorder %s10, 3
    %p27 = por %p25, %p26
    %p28 = scmp.ne.s32.totalorder %s20, %s23
    %p29 = scmp.eq.s32.totalorder %s10, 0
    %p30 = por %p28, %p29
    %p31 = scmp.ne.s32.totalorder %s20, %s23
    %p32 = scmp.eq.s32.totalorder %s15, 3
    %p33 = por %p31, %p32
    %p34 = scmp.ne.s32.totalorder %s23, %s24
    %p35 = scmp.eq.s32.totalorder %s15, 0
    %p36 = por %p34, %p35
    %p37 = scmp.ne.s32.totalorder %s23, %s24
    %p38 = scmp.eq.s32.totalorder %s16, 3
    %p39 = por %p37, %p38
    %p41 = scmp.ne.s32.totalorder %s24, %s40
    %p42 = scmp.eq.s32.totalorder %s16, 0
    %p43 = por %p41, %p42
    %s45 = sadd.s32 %s44, 1
    %p48 = scmp.eq.s32.totalorder %s10, 3
    %p49 = scmp.ne.s32.totalorder %s44, %s46
    %p50 = scmp.eq.s32.totalorder %s10, 0
    %p51 = por %p49, %p50
    %p52 = scmp.ne.s32.totalorder %s44, %s46
    %p53 = scmp.eq.s32.totalorder %s15, 3
    %p54 = por %p52, %p53
    %p55 = scmp.ne.s32.totalorder %s46, %s47
    %p56 = scmp.eq.s32.totalorder %s15, 0
    %p57 = por %p55, %p56
    %p58 = scmp.ne.s32.totalorder %s46, %s47
    %p59 = scmp.eq.s32.totalorder %s16, 3
    %p60 = por %p58, %p59
    %p62 = scmp.ne.s32.totalorder %s47, %s61
    %p63 = scmp.eq.s32.totalorder %s16, 0
    %p64 = por %p62, %p63
    %s66 = sadd.s32 %s65, 1
    %p69 = scmp.eq.s32.totalorder %s10, 3
    %p70 = scmp.ne.s32.totalorder %s65, %s67
    %p71 = scmp.eq.s32.totalorder %s10, 0
    %p72 = por %p70, %p71
    %p73 = scmp.ne.s32.totalorder %s65, %s67
    %p74 = scmp.eq.s32.totalorder %s15, 3
    %p75 = por %p73, %p74
    %p76 = scmp.ne.s32.totalorder %s67, %s68
    %p77 = scmp.eq.s32.totalorder %s15, 0
    %p78 = por %p76, %p77
    %p79 = scmp.ne.s32.totalorder %s67, %s68
    %p80 = scmp.eq.s32.totalorder %s16, 3
    %p81 = por %p79, %p80
    %p83 = scmp.ne.s32.totalorder %s68, %s82
    %p84 = scmp.eq.s32.totalorder %s16, 0
    %p85 = por %p83, %p84
    %s86 = ssub.s32 %s10, %s17
    %p87 = scmp.eq.s32.totalorder %s86, 0
    %s89 = sadd.s32 %s88, 1
    %s90 = scalar_select %p87, %s88, %s89
    %p93 = pneg %p87
    %p94 = scmp.eq.s32.totalorder %s10, 3
    %p95 = por %p93, %p94
    %p96 = scmp.ne.s32.totalorder %s88, %s91
    %p97 = scmp.eq.s32.totalorder %s10, 0
    %p98 = por %p96, %p97
    %p99 = scmp.ne.s32.totalorder %s88, %s91
    %p100 = scmp.eq.s32.totalorder %s15, 3
    %p101 = por %p99, %p100
    %p102 = scmp.ne.s32.totalorder %s91, %s92
    %p103 = scmp.eq.s32.totalorder %s15, 0
    %p104 = por %p102, %p103
    %p105 = scmp.ne.s32.totalorder %s91, %s92
    %p106 = scmp.eq.s32.totalorder %s16, 3
    %p107 = por %p105, %p106
    %p109 = scmp.ne.s32.totalorder %s92, %s108
    %p110 = scmp.eq.s32.totalorder %s16, 0
    %p111 = por %p109, %p110
    %s112 = ssub.s32 %s10, %s17
    %p113 = scmp.eq.s32.totalorder %s112, 0
    %s115 = sadd.s32 %s114, 1
    %s116 = scalar_select %p113, %s114, %s115
    %p119 = pneg %p113
    %p120 = scmp.eq.s32.totalorder %s10, 3
    %p121 = por %p119, %p120
    %p122 = scmp.ne.s32.totalorder %s114, %s117
    %p123 = scmp.eq.s32.totalorder %s10, 0
    %p124 = por %p122, %p123
    %p125 = scmp.ne.s32.totalorder %s114, %s117
    %p126 = scmp.eq.s32.totalorder %s15, 3
    %p127 = por %p125, %p126
    %p128 = scmp.ne.s32.totalorder %s117, %s118
    %p129 = scmp.eq.s32.totalorder %s15, 0
    %p130 = por %p128, %p129
    %p131 = scmp.ne.s32.totalorder %s117, %s118
    %p132 = scmp.eq.s32.totalorder %s16, 3
    %p133 = por %p131, %p132
    %p135 = scmp.ne.s32.totalorder %s118, %s134
    %p136 = scmp.eq.s32.totalorder %s16, 0
    %p137 = por %p135, %p136
    %p138 = scmp.le.s32.totalorder 1, %s10
    %p139 = scmp.lt.s32.totalorder %s10, 5
    %p140 = pnand %p138, %p139
    %p141 = pneg %p140
    // Predicated region
    $region9: #{resnet_encoder_forward.8} parent=5 // pred_check
      _
    $region10: #{resnet_encoder_forward.8} parent=5 // pred_check_branch
      %143 = sbr.rel (%p140) target = $region12
    $region11: #{resnet_encoder_forward.8} parent=5 // pred_region
      %s144 = ssub.s32 %s10, 1
      // Predicated region
      $region13: #{resnet_encoder_forward.8} parent=11 // pred_check
        %p145 = pneg %p57
      $region14: #{resnet_encoder_forward.8} parent=11 // pred_check_branch
        %147 = sbr.rel (%p145) target = $region16
      $region15: #{resnet_encoder_forward.8} parent=11 // pred_region
        _
      $region16: #{resnet_encoder_forward.8} parent=11 // pred_fallthru
        _
      // Predicated region
      $region17: #{resnet_encoder_forward.8} parent=11 // pred_check
        %p148 = pneg %p78
      $region18: #{resnet_encoder_forward.8} parent=11 // pred_check_branch
        %150 = sbr.rel (%p148) target = $region20
      $region19: #{resnet_encoder_forward.8} parent=11 // pred_region
        _
      $region20: #{resnet_encoder_forward.8} parent=11 // pred_fallthru
        _
    $region12: #{resnet_encoder_forward.8} parent=5 // pred_fallthru
      _
    %p151 = scmp.lt.s32.totalorder %s10, 4
    // Predicated region
    $region21: #{resnet_encoder_forward.8} parent=5 // pred_check
      %p152 = pneg %p151
    $region22: #{resnet_encoder_forward.8} parent=5 // pred_check_branch
      %154 = sbr.rel (%p152) target = $region24
    $region23: #{resnet_encoder_forward.8} parent=5 // pred_region
      // Predicated region
      $region25: #{resnet_encoder_forward.8} parent=23 // pred_check
        %p155 = pneg %p30
      $region26: #{resnet_encoder_forward.8} parent=23 // pred_check_branch
        %157 = sbr.rel (%p155) target = $region28
      $region27: #{resnet_encoder_forward.8} parent=23 // pred_region
        %p158 = scmp.lt.s32.totalorder %s10, 3
        %s159 = scalar_select %p158, %s10, 3
        %s160 = smul.addr %s159, 8
        %s161 = smul.addr %s160, 4
        %s162 = scalar_lea.vmem %s0, %s161
      $region28: #{resnet_encoder_forward.8} parent=23 // pred_fallthru
        _
      // Predicated region
      $region29: #{resnet_encoder_forward.8} parent=23 // pred_check
        %p163 = pneg %p98
      $region30: #{resnet_encoder_forward.8} parent=23 // pred_check_branch
        %165 = sbr.rel (%p163) target = $region32
      $region31: #{resnet_encoder_forward.8} parent=23 // pred_region
        %p166 = scmp.lt.s32.totalorder %s10, 3
        %s167 = scalar_select %p166, %s10, 3
        %s168 = smul.addr %s167, 8
        %s169 = smul.addr %s168, 4
        %s170 = scalar_lea.vmem %s3, %s169
      $region32: #{resnet_encoder_forward.8} parent=23 // pred_fallthru
        _
    $region24: #{resnet_encoder_forward.8} parent=5 // pred_fallthru
      _
    %p171 = scmp.le.s32.totalorder 1, %s10
    %p172 = scmp.lt.s32.totalorder %s10, 5
    %p173 = pnand %p171, %p172
    %p174 = pneg %p173
    // Predicated region
    $region33: #{resnet_encoder_forward.8} parent=5 // pred_check
      _
    $region34: #{resnet_encoder_forward.8} parent=5 // pred_check_branch
      %176 = sbr.rel (%p173) target = $region36
    $region35: #{resnet_encoder_forward.8} parent=5 // pred_region
      %s177 = ssub.s32 %s10, 1
      %p178 = scmp.lt.s32.totalorder %s15, 3
      %s179 = scalar_select %p178, %s15, 3
      %s180 = smul.addr %s179, 8
      %s181 = smul.addr %s180, 4
      %s182 = scalar_lea.vmem %s0, %s181
      %p183 = pneg %p36
      %p184 = pneg %p33
      %p185 = pneg %p57
      %p186 = pneg %p54
      %p187 = pneg %p78
      %p188 = pneg %p75
      %p189 = scmp.lt.s32.totalorder %s15, 3
      %s190 = scalar_select %p189, %s15, 3
      %s191 = smul.addr %s190, 8
      %s192 = smul.addr %s191, 4
      %s193 = scalar_lea.vmem %s3, %s192
      %p194 = pneg %p104
      %p195 = pneg %p101
      %p196 = pneg %p130
      %p197 = pneg %p127
      %p198 = scmp.lt.s32.totalorder %s15, 3
      %s199 = scalar_select %p198, %s15, 3
      %s200 = scalar_lea.vmem %s4, %s199
      %p201 = scmp.lt.s32.totalorder %s15, 3
      %s202 = scalar_select %p201, %s15, 3
      %s203 = smul.addr %s202, 8
      %s204 = smul.addr %s203, 4
      %s205 = scalar_lea.vmem %s0, %s204
      %p206 = scmp.lt.s32.totalorder %s15, 3
      %s207 = scalar_select %p206, %s15, 3
      %s208 = smul.addr %s207, 8
      %s209 = smul.addr %s208, 4
      %s210 = scalar_lea.vmem %s3, %s209
      %p211 = scmp.lt.s32.totalorder %s15, 3
      %s212 = scalar_select %p211, %s15, 3
      %s213 = scalar_lea.vmem %s4, %s212
      %v214 = vld [vmem:[%s205] sm:$0xf]
      %v215 = vld [vmem:[%s205 + $0x4] sm:$0xf]
      %v216 = vld [vmem:[%s205 + $0x8] sm:$0xf]
      %v217 = vld [vmem:[%s205 + $0xc] sm:$0xf]
      %v218 = vld [vmem:[%s205 + $0x10] sm:$0xf]
      %v219 = vld [vmem:[%s205 + $0x14] sm:$0xf]
      %v220 = vld [vmem:[%s205 + $0x18] sm:$0xf]
      %v221 = vld [vmem:[%s205 + $0x1c] sm:$0xf]
      %v222 = vld [vmem:[%s1] sm:$0xf]
      %v223 = vld [vmem:[%s1 + $0x4] sm:$0xf]
      %v224 = vld [vmem:[%s1 + $0x8] sm:$0xf]
      %v225 = vld [vmem:[%s1 + $0xc] sm:$0xf]
      %v226 = vld [vmem:[%s1 + $0x10] sm:$0xf]
      %v227 = vld [vmem:[%s1 + $0x14] sm:$0xf]
      %v228 = vld [vmem:[%s1 + $0x18] sm:$0xf]
      %v229 = vld [vmem:[%s1 + $0x1c] sm:$0xf]
      %v230 = vld [vmem:[%s1 + $0x20] sm:$0xf]
      %v231 = vld [vmem:[%s1 + $0x24] sm:$0xf]
      %v232 = vld [vmem:[%s1 + $0x28] sm:$0xf]
      %v233 = vld [vmem:[%s1 + $0x2c] sm:$0xf]
      %v234 = vld [vmem:[%s1 + $0x30] sm:$0xf]
      %v235 = vld [vmem:[%s1 + $0x34] sm:$0xf]
      %v236 = vld [vmem:[%s1 + $0x38] sm:$0xf]
      %v237 = vld [vmem:[%s1 + $0x3c] sm:$0xf]
      %v238 = vld [vmem:[%s2] sm:$0x1]
      %v240 = vperm.slane %v238, 0
      %v250 = vunpack.c.l.b16 %v214
      %v251 = vunpack.c.l.b16 %v215
      %v252 = vunpack.c.l.b16 %v216
      %v253 = vunpack.c.l.b16 %v217
      %v254 = vunpack.c.l.b16 %v218
      %v255 = vunpack.c.l.b16 %v219
      %v256 = vunpack.c.l.b16 %v220
      %v257 = vunpack.c.l.b16 %v221
      %v258 = vpack.c.b16 %v251, %v250
      %v259 = vpack.c.b16 %v253, %v252
      %v260 = vpack.c.b16 %v255, %v254
      %v261 = vpack.c.b16 %v257, %v256
      %v282 = vunpack.c.l.b16 %v222
      %v283 = vunpack.c.l.b16 %v223
      %v284 = vunpack.c.l.b16 %v224
      %v285 = vunpack.c.l.b16 %v225
      %v286 = vunpack.c.l.b16 %v226
      %v287 = vunpack.c.l.b16 %v227
      %v288 = vunpack.c.l.b16 %v228
      %v289 = vunpack.c.l.b16 %v229
      %v290 = vunpack.c.l.b16 %v230
      %v291 = vunpack.c.l.b16 %v231
      %v292 = vunpack.c.l.b16 %v232
      %v293 = vunpack.c.l.b16 %v233
      %v294 = vunpack.c.l.b16 %v234
      %v295 = vunpack.c.l.b16 %v235
      %v296 = vunpack.c.l.b16 %v236
      %v297 = vunpack.c.l.b16 %v237
      %v298 = vpack.c.b16 %v283, %v282
      %v299 = vpack.c.b16 %v285, %v284
      %v300 = vpack.c.b16 %v287, %v286
      %v301 = vpack.c.b16 %v289, %v288
      %v302 = vpack.c.b16 %v291, %v290
      %v303 = vpack.c.b16 %v293, %v292
      %v304 = vpack.c.b16 %v295, %v294
      %v305 = vpack.c.b16 %v297, %v296
      %314 = vmatpush.bf16.msra.mxu0 %v305
      %315 = vmatpush.bf16.msra.mxu0 %v304
      %316 = vmatpush.bf16.msra.mxu0 %v303
      %317 = vmatpush.bf16.msra.mxu0 %v302
      %318 = vmatpush.bf16.msra.mxu0 %v301
      %319 = vmatpush.bf16.msra.mxu0 %v300
      %320 = vmatpush.bf16.msra.mxu0 %v299
      %321 = vmatpush.bf16.msra.mxu0 %v298
      %322 = vmatmul.bf16.gmra.mxu0 %v258
      %v323 = vpop.f32.mrf.mxu0
      %v324 = vadd.f32 %v240, %v323
      %v325 = vpop.f32.mrf.mxu0
      %v326 = vadd.f32 %v240, %v325
      %327 = vmatmul.bf16.gmra.mxu0 %v259
      %v328 = vpop.f32.mrf.mxu0
      %v329 = vadd.f32 %v240, %v328
      %v330 = vpop.f32.mrf.mxu0
      %v331 = vadd.f32 %v240, %v330
      %332 = vmatmul.bf16.gmra.mxu0 %v260
      %v333 = vpop.f32.mrf.mxu0
      %v334 = vadd.f32 %v240, %v333
      %v335 = vpop.f32.mrf.mxu0
      %v336 = vadd.f32 %v240, %v335
      %337 = vmatmul.bf16.gmra.mxu0 %v261
      %v338 = vpop.f32.mrf.mxu0
      %v339 = vadd.f32 %v240, %v338
      %v340 = vpop.f32.mrf.mxu0
      %v341 = vadd.f32 %v240, %v340
      %342 = vdwg.mxu0
      %v343 = vld [vmem:[%s210] sm:$0xf]
      %v344 = vld [vmem:[%s210 + $0x4] sm:$0xf]
      %v345 = vld [vmem:[%s210 + $0x8] sm:$0xf]
      %v346 = vld [vmem:[%s210 + $0xc] sm:$0xf]
      %v347 = vld [vmem:[%s210 + $0x10] sm:$0xf]
      %v348 = vld [vmem:[%s210 + $0x14] sm:$0xf]
      %v349 = vld [vmem:[%s210 + $0x18] sm:$0xf]
      %v350 = vld [vmem:[%s210 + $0x1c] sm:$0xf]
      %v351 = vunpack.c.l.bf16 %v343
      %v352 = vunpack.c.l.bf16 %v344
      %v353 = vunpack.c.l.bf16 %v345
      %v354 = vunpack.c.l.bf16 %v346
      %v355 = vunpack.c.l.bf16 %v347
      %v356 = vunpack.c.l.bf16 %v348
      %v357 = vunpack.c.l.bf16 %v349
      %v358 = vunpack.c.l.bf16 %v350
      %v359 = vadd.f32 %v324, %v351
      %v360 = vadd.f32 %v326, %v352
      %v361 = vadd.f32 %v329, %v353
      %v362 = vadd.f32 %v331, %v354
      %v363 = vadd.f32 %v334, %v355
      %v364 = vadd.f32 %v336, %v356
      %v365 = vadd.f32 %v339, %v357
      %v366 = vadd.f32 %v341, %v358
      %v367 = vmax.f32 %v359, 0.0
      %v368 = vmax.f32 %v360, 0.0
      %v369 = vmax.f32 %v361, 0.0
      %v370 = vmax.f32 %v362, 0.0
      %v371 = vmax.f32 %v363, 0.0
      %v372 = vmax.f32 %v364, 0.0
      %v373 = vmax.f32 %v365, 0.0
      %v374 = vmax.f32 %v366, 0.0
      %v375 = vadd.f32 %v367, %v368
      %v376 = vadd.f32 %v375, %v369
      %v377 = vadd.f32 %v376, %v370
      %v378 = vadd.f32 %v377, %v371
      %v379 = vadd.f32 %v378, %v372
      %v380 = vadd.f32 %v379, %v373
      %v381 = vadd.f32 %v380, %v374
      %v382 = vrot.slane %v381, 4
      %v383 = vadd.f32 %v381, %v382
      %v384 = vrot.slane %v383, 2
      %v385 = vadd.f32 %v383, %v384
      %v386 = vrot.slane %v385, 1
      %v387 = vadd.f32 %v385, %v386
      %v388 = vrcp.pop 64.0
      %v389 = vmul.f32 64.0, %v388
      %v390 = vsub.f32 1.0, %v389
      %v391 = vmul.f32 %v388, %v390
      %v392 = vadd.f32 %v388, %v391
      %vm393 = vweird.f32 %v388
      %v394 = vsel %vm393, %v388, %v392
      %v395 = vmul.f32 %v387, %v394
      %396 = vst [vmem:[%s213] sm:$0x1] %v395
      %p397 = scmp.lt.s32.totalorder %s15, 3
      %s398 = scalar_select %p397, %s15, 3
      %s399 = scalar_lea.vmem %s4, %s398
      // Predicated region
      $region37: #{resnet_encoder_forward.8} parent=35 // pred_check
        %p400 = pneg %p127
      $region38: #{resnet_encoder_forward.8} parent=35 // pred_check_branch
        %402 = sbr.rel (%p400) target = $region40
      $region39: #{resnet_encoder_forward.8} parent=35 // pred_region
        _
      $region40: #{resnet_encoder_forward.8} parent=35 // pred_fallthru
        _
    $region36: #{resnet_encoder_forward.8} parent=5 // pred_fallthru
      _
    %p403 = scmp.le.s32.totalorder 2, %s10
    // Predicated region
    $region41: #{resnet_encoder_forward.8} parent=5 // pred_check
      %p404 = pneg %p403
    $region42: #{resnet_encoder_forward.8} parent=5 // pred_check_branch
      %406 = sbr.rel (%p404) target = $region44
    $region43: #{resnet_encoder_forward.8} parent=5 // pred_region
      %s407 = ssub.s32 %s10, 2
      // Predicated region
      $region45: #{resnet_encoder_forward.8} parent=43 // pred_check
        %p408 = pneg %p133
      $region46: #{resnet_encoder_forward.8} parent=43 // pred_check_branch
        %410 = sbr.rel (%p408) target = $region48
      $region47: #{resnet_encoder_forward.8} parent=43 // pred_region
        %p411 = scmp.lt.s32.totalorder %s16, 3
        %s412 = scalar_select %p411, %s16, 3
        %s413 = scalar_lea.vmem %s4, %s412
      $region48: #{resnet_encoder_forward.8} parent=43 // pred_fallthru
        _
    $region44: #{resnet_encoder_forward.8} parent=5 // pred_fallthru
      _
  $region6: #{resnet_encoder_forward.8} parent=0 // loop_footer
    %s14 = sadd.s32 1, %s10
  $region7: #{resnet_encoder_forward.8} parent=0 // loop_footer_branch
    %9 = sbr.rel target = $region3
  $region8: #{resnet_encoder_forward.8} parent=0 // loop_exit
    _

// kernel: resnet_encoder_forward.7
$region0: #{resnet_encoder_forward.7}
  #allocation0 [shape = 'u32[]', space=smem, size = 0x4, offset = 0x4, fixed_abs, tag = 'smem constant byte address 0x4 - core index']
  #allocation1 [shape = 'u32[72,128]{1,0:T(1,128)}', space=vmem, size = 0x9000, scoped, tag = 'internal scratch']
  %s0 = inlined_call_operand.vmem [shape: bf16[4,10,10,128], index: 0, kind: input, shape index: {}]
  %s1 = inlined_call_operand.vmem [shape: bf16[9,128,128], index: 1, kind: input, shape index: {}]
  %s2 = inlined_call_operand.vmem [shape: f32[1,128], index: 2, kind: input, shape index: {}]
  %s3 = inlined_call_operand.vmem [shape: bf16[4,64,128], index: 3, kind: output, shape index: {}]
  %s4 = sld [smem:[#allocation0]]
  $region45: #{resnet_encoder_forward.7} parent=0
    _
  %s6 = ssub.s32 1, %s4
  %s7 = scalar_select 0, %s6, %s4
  loop: start=0, step=1, limit=6
  $region2: #{resnet_encoder_forward.7} parent=0 // loop_pre_header
    _
  $region3: #{resnet_encoder_forward.7} parent=0 // loop_header
    %s9 = sphi 0, %s13
    %p10 = scmp.ge.s32.totalorder %s9, 6
    %s19 = sphi 0, %s21
    %s22 = sphi 0, %s19
    %s23 = sphi 0, %s22
    %s39 = sphi 0, %s23
    %s43 = sphi 0, %s43
    %s45 = sphi 0, %s43
    %s46 = sphi 0, %s45
    %s60 = sphi 0, %s46
    %s64 = sphi 0, %s64
    %s66 = sphi 0, %s64
    %s67 = sphi 0, %s66
    %s81 = sphi 0, %s67
    %s87 = sphi 0, %s89
    %s90 = sphi 0, %s87
    %s91 = sphi 0, %s90
    %s107 = sphi 0, %s91
  $region4: #{resnet_encoder_forward.7} parent=0 // loop_header_branch
    %12 = sbr.rel (%p10) target = $region8
  $region5: #{resnet_encoder_forward.7} parent=0 // loop_body
    %s14 = ssub.s32 %s9, 1
    %s15 = ssub.s32 %s9, 2
    %s16 = sadd.s32 %s9, 1
    %s17 = ssub.s32 %s9, %s16
    %p18 = scmp.eq.s32.totalorder %s17, 0
    %s20 = sadd.s32 %s19, 1
    %s21 = scalar_select %p18, %s19, %s20
    %p24 = pneg %p18
    %p25 = scmp.eq.s32.totalorder %s9, 3
    %p26 = por %p24, %p25
    %p27 = scmp.ne.s32.totalorder %s19, %s22
    %p28 = scmp.eq.s32.totalorder %s9, 0
    %p29 = por %p27, %p28
    %p30 = scmp.ne.s32.totalorder %s19, %s22
    %p31 = scmp.eq.s32.totalorder %s14, 3
    %p32 = por %p30, %p31
    %p33 = scmp.ne.s32.totalorder %s22, %s23
    %p34 = scmp.eq.s32.totalorder %s14, 0
    %p35 = por %p33, %p34
    %p36 = scmp.ne.s32.totalorder %s22, %s23
    %p37 = scmp.eq.s32.totalorder %s15, 3
    %p38 = por %p36, %p37
    %p40 = scmp.ne.s32.totalorder %s23, %s39
    %p41 = scmp.eq.s32.totalorder %s15, 0
    %p42 = por %p40, %p41
    %s44 = sadd.s32 %s43, 1
    %p47 = scmp.eq.s32.totalorder %s9, 3
    %p48 = scmp.ne.s32.totalorder %s43, %s45
    %p49 = scmp.eq.s32.totalorder %s9, 0
    %p50 = por %p48, %p49
    %p51 = scmp.ne.s32.totalorder %s43, %s45
    %p52 = scmp.eq.s32.totalorder %s14, 3
    %p53 = por %p51, %p52
    %p54 = scmp.ne.s32.totalorder %s45, %s46
    %p55 = scmp.eq.s32.totalorder %s14, 0
    %p56 = por %p54, %p55
    %p57 = scmp.ne.s32.totalorder %s45, %s46
    %p58 = scmp.eq.s32.totalorder %s15, 3
    %p59 = por %p57, %p58
    %p61 = scmp.ne.s32.totalorder %s46, %s60
    %p62 = scmp.eq.s32.totalorder %s15, 0
    %p63 = por %p61, %p62
    %s65 = sadd.s32 %s64, 1
    %p68 = scmp.eq.s32.totalorder %s9, 3
    %p69 = scmp.ne.s32.totalorder %s64, %s66
    %p70 = scmp.eq.s32.totalorder %s9, 0
    %p71 = por %p69, %p70
    %p72 = scmp.ne.s32.totalorder %s64, %s66
    %p73 = scmp.eq.s32.totalorder %s14, 3
    %p74 = por %p72, %p73
    %p75 = scmp.ne.s32.totalorder %s66, %s67
    %p76 = scmp.eq.s32.totalorder %s14, 0
    %p77 = por %p75, %p76
    %p78 = scmp.ne.s32.totalorder %s66, %s67
    %p79 = scmp.eq.s32.totalorder %s15, 3
    %p80 = por %p78, %p79
    %p82 = scmp.ne.s32.totalorder %s67, %s81
    %p83 = scmp.eq.s32.totalorder %s15, 0
    %p84 = por %p82, %p83
    %s85 = ssub.s32 %s9, %s16
    %p86 = scmp.eq.s32.totalorder %s85, 0
    %s88 = sadd.s32 %s87, 1
    %s89 = scalar_select %p86, %s87, %s88
    %p92 = pneg %p86
    %p93 = scmp.eq.s32.totalorder %s9, 3
    %p94 = por %p92, %p93
    %p95 = scmp.ne.s32.totalorder %s87, %s90
    %p96 = scmp.eq.s32.totalorder %s9, 0
    %p97 = por %p95, %p96
    %p98 = scmp.ne.s32.totalorder %s87, %s90
    %p99 = scmp.eq.s32.totalorder %s14, 3
    %p100 = por %p98, %p99
    %p101 = scmp.ne.s32.totalorder %s90, %s91
    %p102 = scmp.eq.s32.totalorder %s14, 0
    %p103 = por %p101, %p102
    %p104 = scmp.ne.s32.totalorder %s90, %s91
    %p105 = scmp.eq.s32.totalorder %s15, 3
    %p106 = por %p104, %p105
    %p108 = scmp.ne.s32.totalorder %s91, %s107
    %p109 = scmp.eq.s32.totalorder %s15, 0
    %p110 = por %p108, %p109
    %p111 = scmp.le.s32.totalorder 1, %s9
    %p112 = scmp.lt.s32.totalorder %s9, 5
    %p113 = pnand %p111, %p112
    %p114 = pneg %p113
    // Predicated region
    $region9: #{resnet_encoder_forward.7} parent=5 // pred_check
      _
    $region10: #{resnet_encoder_forward.7} parent=5 // pred_check_branch
      %116 = sbr.rel (%p113) target = $region12
    $region11: #{resnet_encoder_forward.7} parent=5 // pred_region
      %s117 = ssub.s32 %s9, 1
      // Predicated region
      $region13: #{resnet_encoder_forward.7} parent=11 // pred_check
        %p118 = pneg %p56
      $region14: #{resnet_encoder_forward.7} parent=11 // pred_check_branch
        %120 = sbr.rel (%p118) target = $region16
      $region15: #{resnet_encoder_forward.7} parent=11 // pred_region
        _
      $region16: #{resnet_encoder_forward.7} parent=11 // pred_fallthru
        _
      // Predicated region
      $region17: #{resnet_encoder_forward.7} parent=11 // pred_check
        %p121 = pneg %p77
      $region18: #{resnet_encoder_forward.7} parent=11 // pred_check_branch
        %123 = sbr.rel (%p121) target = $region20
      $region19: #{resnet_encoder_forward.7} parent=11 // pred_region
        _
      $region20: #{resnet_encoder_forward.7} parent=11 // pred_fallthru
        _
    $region12: #{resnet_encoder_forward.7} parent=5 // pred_fallthru
      _
    %p124 = scmp.lt.s32.totalorder %s9, 4
    // Predicated region
    $region21: #{resnet_encoder_forward.7} parent=5 // pred_check
      %p125 = pneg %p124
    $region22: #{resnet_encoder_forward.7} parent=5 // pred_check_branch
      %127 = sbr.rel (%p125) target = $region24
    $region23: #{resnet_encoder_forward.7} parent=5 // pred_region
      // Predicated region
      $region25: #{resnet_encoder_forward.7} parent=23 // pred_check
        %p128 = pneg %p29
      $region26: #{resnet_encoder_forward.7} parent=23 // pred_check_branch
        %130 = sbr.rel (%p128) target = $region28
      $region27: #{resnet_encoder_forward.7} parent=23 // pred_region
        %p131 = scmp.lt.s32.totalorder %s9, 3
        %s132 = scalar_select %p131, %s9, 3
        %s133 = smul.addr %s132, 20
        %s134 = smul.addr %s133, 4
        %s135 = scalar_lea.vmem %s0, %s134
      $region28: #{resnet_encoder_forward.7} parent=23 // pred_fallthru
        _
    $region24: #{resnet_encoder_forward.7} parent=5 // pred_fallthru
      _
    %p136 = scmp.le.s32.totalorder 1, %s9
    %p137 = scmp.lt.s32.totalorder %s9, 5
    %p138 = pnand %p136, %p137
    %p139 = pneg %p138
    // Predicated region
    $region29: #{resnet_encoder_forward.7} parent=5 // pred_check
      _
    $region30: #{resnet_encoder_forward.7} parent=5 // pred_check_branch
      %141 = sbr.rel (%p138) target = $region32
    $region31: #{resnet_encoder_forward.7} parent=5 // pred_region
      %s142 = ssub.s32 %s9, 1
      %p143 = scmp.lt.s32.totalorder %s14, 3
      %s144 = scalar_select %p143, %s14, 3
      %s145 = smul.addr %s144, 20
      %s146 = smul.addr %s145, 4
      %s147 = scalar_lea.vmem %s0, %s146
      %p148 = pneg %p35
      %p149 = pneg %p32
      %p150 = pneg %p56
      %p151 = pneg %p53
      %p152 = pneg %p77
      %p153 = pneg %p74
      %p154 = pneg %p103
      %p155 = pneg %p100
      %p156 = scmp.lt.s32.totalorder %s14, 3
      %s157 = scalar_select %p156, %s14, 3
      %s158 = smul.addr %s157, 8
      %s159 = smul.addr %s158, 4
      %s160 = scalar_lea.vmem %s3, %s159
      %p161 = scmp.lt.s32.totalorder %s14, 3
      %s162 = scalar_select %p161, %s14, 3
      %s163 = smul.addr %s162, 20
      %s164 = smul.addr %s163, 4
      %s165 = scalar_lea.vmem %s0, %s164
      %p166 = scmp.lt.s32.totalorder %s14, 3
      %s167 = scalar_select %p166, %s14, 3
      %s168 = smul.addr %s167, 8
      %s169 = smul.addr %s168, 4
      %s170 = scalar_lea.vmem %s3, %s169
      %v171 = vld [vmem:[%s165] sm:$0xf]
      %v172 = vld [vmem:[%s165 + $0x4] sm:$0x1]
      %v173 = vld [vmem:[%s165 + $0x8] sm:$0xf]
      %v174 = vld [vmem:[%s165 + $0xc] sm:$0x1]
      %v175 = vld [vmem:[%s165 + $0x10] sm:$0xf]
      %v176 = vld [vmem:[%s165 + $0x14] sm:$0x1]
      %v177 = vld [vmem:[%s165 + $0x18] sm:$0xf]
      %v178 = vld [vmem:[%s165 + $0x1c] sm:$0x1]
      %v179 = vld [vmem:[%s165 + $0x20] sm:$0xf]
      %v180 = vld [vmem:[%s165 + $0x24] sm:$0x1]
      %v181 = vld [vmem:[%s165 + $0x28] sm:$0xf]
      %v182 = vld [vmem:[%s165 + $0x2c] sm:$0x1]
      %v183 = vld [vmem:[%s165 + $0x30] sm:$0xf]
      %v184 = vld [vmem:[%s165 + $0x34] sm:$0x1]
      %v185 = vld [vmem:[%s165 + $0x38] sm:$0xf]
      %v186 = vld [vmem:[%s165 + $0x3c] sm:$0x1]
      %v187 = vld [vmem:[%s165 + $0x40] sm:$0xf]
      %v188 = vld [vmem:[%s165 + $0x44] sm:$0x1]
      %v189 = vld [vmem:[%s165 + $0x48] sm:$0xf]
      %v190 = vld [vmem:[%s165 + $0x4c] sm:$0x1]
      %v191 = vld [vmem:[%s1] sm:$0xf]
      %v192 = vld [vmem:[%s1 + $0x4] sm:$0xf]
      %v193 = vld [vmem:[%s1 + $0x8] sm:$0xf]
      %v194 = vld [vmem:[%s1 + $0xc] sm:$0xf]
      %v195 = vld [vmem:[%s1 + $0x10] sm:$0xf]
      %v196 = vld [vmem:[%s1 + $0x14] sm:$0xf]
      %v197 = vld [vmem:[%s1 + $0x18] sm:$0xf]
      %v198 = vld [vmem:[%s1 + $0x1c] sm:$0xf]
      %v199 = vld [vmem:[%s1 + $0x20] sm:$0xf]
      %v200 = vld [vmem:[%s1 + $0x24] sm:$0xf]
      %v201 = vld [vmem:[%s1 + $0x28] sm:$0xf]
      %v202 = vld [vmem:[%s1 + $0x2c] sm:$0xf]
      %v203 = vld [vmem:[%s1 + $0x30] sm:$0xf]
      %v204 = vld [vmem:[%s1 + $0x34] sm:$0xf]
      %v205 = vld [vmem:[%s1 + $0x38] sm:$0xf]
      %v206 = vld [vmem:[%s1 + $0x3c] sm:$0xf]
      %vm207 = vsmask.f32 3328
      %vm208 = vsmask.f32 7440
      %vm209 = vmor %vm207, %vm208
      %v211 = vshrl.u32 %v171, 16
      %v213 = vrot.slane %v211, 4
      %v214 = vshll.u32 %v171, 16
      %v216 = vrot.slane %v214, 5
      %v217 = vor.u32 %v213, %v216
      %v218 = vrot.slane %v217, 4
      %v220 = vshll.u32 %v172, 16
      %v222 = vrot.slane %v220, 5
      %v223 = vsel %vm209, %v218, %v222
      %v225 = vshrl.u32 %v173, 16
      %v227 = vrot.slane %v225, 4
      %v228 = vshll.u32 %v173, 16
      %v230 = vrot.slane %v228, 5
      %v231 = vor.u32 %v227, %v230
      %v232 = vrot.slane %v231, 4
      %v234 = vshll.u32 %v174, 16
      %v236 = vrot.slane %v234, 5
      %v237 = vsel %vm209, %v232, %v236
      %v239 = vshrl.u32 %v175, 16
      %v241 = vrot.slane %v239, 4
      %v242 = vshll.u32 %v175, 16
      %v244 = vrot.slane %v242, 5
      %v245 = vor.u32 %v241, %v244
      %v246 = vrot.slane %v245, 4
      %v248 = vshll.u32 %v176, 16
      %v250 = vrot.slane %v248, 5
      %v251 = vsel %vm209, %v246, %v250
      %v253 = vshrl.u32 %v177, 16
      %v255 = vrot.slane %v253, 4
      %v256 = vshll.u32 %v177, 16
      %v258 = vrot.slane %v256, 5
      %v259 = vor.u32 %v255, %v258
      %v260 = vrot.slane %v259, 4
      %v262 = vshll.u32 %v178, 16
      %v264 = vrot.slane %v262, 5
      %v265 = vsel %vm209, %v260, %v264
      %v267 = vshrl.u32 %v179, 16
      %v269 = vrot.slane %v267, 4
      %v270 = vshll.u32 %v179, 16
      %v272 = vrot.slane %v270, 5
      %v273 = vor.u32 %v269, %v272
      %v274 = vrot.slane %v273, 4
      %v276 = vshll.u32 %v180, 16
      %v278 = vrot.slane %v276, 5
      %v279 = vsel %vm209, %v274, %v278
      %v281 = vshrl.u32 %v181, 16
      %v283 = vrot.slane %v281, 4
      %v284 = vshll.u32 %v181, 16
      %v286 = vrot.slane %v284, 5
      %v287 = vor.u32 %v283, %v286
      %v288 = vrot.slane %v287, 4
      %v290 = vshll.u32 %v182, 16
      %v292 = vrot.slane %v290, 5
      %v293 = vsel %vm209, %v288, %v292
      %v295 = vshrl.u32 %v183, 16
      %v297 = vrot.slane %v295, 4
      %v298 = vshll.u32 %v183, 16
      %v300 = vrot.slane %v298, 5
      %v301 = vor.u32 %v297, %v300
      %v302 = vrot.slane %v301, 4
      %v304 = vshll.u32 %v184, 16
      %v306 = vrot.slane %v304, 5
      %v307 = vsel %vm209, %v302, %v306
      %v309 = vshrl.u32 %v185, 16
      %v311 = vrot.slane %v309, 4
      %v312 = vshll.u32 %v185, 16
      %v314 = vrot.slane %v312, 5
      %v315 = vor.u32 %v311, %v314
      %v316 = vrot.slane %v315, 4
      %v318 = vshll.u32 %v186, 16
      %v320 = vrot.slane %v318, 5
      %v321 = vsel %vm209, %v316, %v320
      %s322 = scalar_lea.vmem %s1, 64
      %v323 = vld [vmem:[%s322] sm:$0xf]
      %v324 = vld [vmem:[%s322 + $0x4] sm:$0xf]
      %v325 = vld [vmem:[%s322 + $0x8] sm:$0xf]
      %v326 = vld [vmem:[%s322 + $0xc] sm:$0xf]
      %v327 = vld [vmem:[%s322 + $0x10] sm:$0xf]
      %v328 = vld [vmem:[%s322 + $0x14] sm:$0xf]
      %v329 = vld [vmem:[%s322 + $0x18] sm:$0xf]
      %v330 = vld [vmem:[%s322 + $0x1c] sm:$0xf]
      %v331 = vld [vmem:[%s322 + $0x20] sm:$0xf]
      %v332 = vld [vmem:[%s322 + $0x24] sm:$0xf]
      %v333 = vld [vmem:[%s322 + $0x28] sm:$0xf]
      %v334 = vld [vmem:[%s322 + $0x2c] sm:$0xf]
      %v335 = vld [vmem:[%s322 + $0x30] sm:$0xf]
      %v336 = vld [vmem:[%s322 + $0x34] sm:$0xf]
      %v337 = vld [vmem:[%s322 + $0x38] sm:$0xf]
      %v338 = vld [vmem:[%s322 + $0x3c] sm:$0xf]
      %v339 = vunpack.c.l.b16 %v223
      %v340 = vunpack.c.l.b16 %v237
      %v341 = vunpack.c.l.b16 %v251
      %v342 = vunpack.c.l.b16 %v265
      %v343 = vunpack.c.l.b16 %v279
      %v344 = vunpack.c.l.b16 %v293
      %v345 = vunpack.c.l.b16 %v307
      %v346 = vunpack.c.l.b16 %v321
      %v347 = vpack.c.b16 %v340, %v339
      %v348 = vpack.c.b16 %v342, %v341
      %v349 = vpack.c.b16 %v344, %v343
      %v350 = vpack.c.b16 %v346, %v345
      %v371 = vunpack.c.l.b16 %v323
      %v372 = vunpack.c.l.b16 %v324
      %v373 = vunpack.c.l.b16 %v325
      %v374 = vunpack.c.l.b16 %v326
      %v375 = vunpack.c.l.b16 %v327
      %v376 = vunpack.c.l.b16 %v328
      %v377 = vunpack.c.l.b16 %v329
      %v378 = vunpack.c.l.b16 %v330
      %v379 = vunpack.c.l.b16 %v331
      %v380 = vunpack.c.l.b16 %v332
      %v381 = vunpack.c.l.b16 %v333
      %v382 = vunpack.c.l.b16 %v334
      %v383 = vunpack.c.l.b16 %v335
      %v384 = vunpack.c.l.b16 %v336
      %v385 = vunpack.c.l.b16 %v337
      %v386 = vunpack.c.l.b16 %v338
      %v387 = vpack.c.b16 %v372, %v371
      %v388 = vpack.c.b16 %v374, %v373
      %v389 = vpack.c.b16 %v376, %v375
      %v390 = vpack.c.b16 %v378, %v377
      %v391 = vpack.c.b16 %v380, %v379
      %v392 = vpack.c.b16 %v382, %v381
      %v393 = vpack.c.b16 %v384, %v383
      %v394 = vpack.c.b16 %v386, %v385
      %403 = vmatpush.bf16.msra.mxu0 %v394
      %404 = vmatpush.bf16.msra.mxu0 %v393
      %405 = vmatpush.bf16.msra.mxu0 %v392
      %406 = vmatpush.bf16.msra.mxu0 %v391
      %407 = vmatpush.bf16.msra.mxu0 %v390
      %408 = vmatpush.bf16.msra.mxu0 %v389
      %409 = vmatpush.bf16.msra.mxu0 %v388
      %410 = vmatpush.bf16.msra.mxu0 %v387
      %411 = vmatmul.bf16.gmra.mxu0 %v347
      %v412 = vpop.f32.mrf.mxu0
      %v413 = vadd.f32 0.0, %v412
      %v414 = vpop.f32.mrf.mxu0
      %v415 = vadd.f32 0.0, %v414
      %416 = vmatmul.bf16.gmra.mxu0 %v348
      %v417 = vpop.f32.mrf.mxu0
      %v418 = vadd.f32 0.0, %v417
      %v419 = vpop.f32.mrf.mxu0
      %v420 = vadd.f32 0.0, %v419
      %421 = vmatmul.bf16.gmra.mxu0 %v349
      %v422 = vpop.f32.mrf.mxu0
      %v423 = vadd.f32 0.0, %v422
      %v424 = vpop.f32.mrf.mxu0
      %v425 = vadd.f32 0.0, %v424
      %426 = vmatmul.bf16.gmra.mxu0 %v350
      %v427 = vpop.f32.mrf.mxu0
      %v428 = vadd.f32 0.0, %v427
      %v429 = vpop.f32.mrf.mxu0
      %v430 = vadd.f32 0.0, %v429
      %431 = vdwg.mxu0
      %v440 = vunpack.c.l.b16 %v171
      %v441 = vunpack.c.l.b16 %v173
      %v442 = vunpack.c.l.b16 %v175
      %v443 = vunpack.c.l.b16 %v177
      %v444 = vunpack.c.l.b16 %v179
      %v445 = vunpack.c.l.b16 %v181
      %v446 = vunpack.c.l.b16 %v183
      %v447 = vunpack.c.l.b16 %v185
      %v448 = vpack.c.b16 %v441, %v440
      %v449 = vpack.c.b16 %v443, %v442
      %v450 = vpack.c.b16 %v445, %v444
      %v451 = vpack.c.b16 %v447, %v446
      %v472 = vunpack.c.l.b16 %v191
      %v473 = vunpack.c.l.b16 %v192
      %v474 = vunpack.c.l.b16 %v193
      %v475 = vunpack.c.l.b16 %v194
      %v476 = vunpack.c.l.b16 %v195
      %v477 = vunpack.c.l.b16 %v196
      %v478 = vunpack.c.l.b16 %v197
      %v479 = vunpack.c.l.b16 %v198
      %v480 = vunpack.c.l.b16 %v199
      %v481 = vunpack.c.l.b16 %v200
      %v482 = vunpack.c.l.b16 %v201
      %v483 = vunpack.c.l.b16 %v202
      %v484 = vunpack.c.l.b16 %v203
      %v485 = vunpack.c.l.b16 %v204
      %v486 = vunpack.c.l.b16 %v205
      %v487 = vunpack.c.l.b16 %v206
      %v488 = vpack.c.b16 %v473, %v472
      %v489 = vpack.c.b16 %v475, %v474
      %v490 = vpack.c.b16 %v477, %v476
      %v491 = vpack.c.b16 %v479, %v478
      %v492 = vpack.c.b16 %v481, %v480
      %v493 = vpack.c.b16 %v483, %v482
      %v494 = vpack.c.b16 %v485, %v484
      %v495 = vpack.c.b16 %v487, %v486
      %504 = vmatpush.bf16.msra.mxu0 %v495
      %505 = vmatpush.bf16.msra.mxu0 %v494
      %506 = vmatpush.bf16.msra.mxu0 %v493
      %507 = vmatpush.bf16.msra.mxu0 %v492
      %508 = vmatpush.bf16.msra.mxu0 %v491
      %509 = vmatpush.bf16.msra.mxu0 %v490
      %510 = vmatpush.bf16.msra.mxu0 %v489
      %511 = vmatpush.bf16.msra.mxu0 %v488
      %512 = vmatmul.bf16.gmra.mxu0 %v448
      %v513 = vpop.f32.mrf.mxu0
      %v514 = vadd.f32 %v413, %v513
      %v515 = vpop.f32.mrf.mxu0
      %v516 = vadd.f32 %v415, %v515
      %517 = vmatmul.bf16.gmra.mxu0 %v449
      %v518 = vpop.f32.mrf.mxu0
      %v519 = vadd.f32 %v418, %v518
      %v520 = vpop.f32.mrf.mxu0
      %v521 = vadd.f32 %v420, %v520
      %522 = vmatmul.bf16.gmra.mxu0 %v450
      %v523 = vpop.f32.mrf.mxu0
      %v524 = vadd.f32 %v423, %v523
      %v525 = vpop.f32.mrf.mxu0
      %v526 = vadd.f32 %v425, %v525
      %527 = vmatmul.bf16.gmra.mxu0 %v451
      %v528 = vpop.f32.mrf.mxu0
      %v529 = vadd.f32 %v428, %v528
      %v530 = vpop.f32.mrf.mxu0
      %v531 = vadd.f32 %v430, %v530
      %532 = vdwg.mxu0
      %vm541 = vcmask 1042432
      %vm542 = vcmask 1046532
      %vm543 = vmor %vm541, %vm542
      %v544 = vrot.slane %v171, 5
      %v545 = vrot.slane %v544, 4
      %v546 = vrot.slane %v172, 5
      %v547 = vsel %vm543, %v545, %v546
      %v548 = vrot.slane %v173, 5
      %v549 = vrot.slane %v548, 4
      %v550 = vrot.slane %v174, 5
      %v551 = vsel %vm543, %v549, %v550
      %v552 = vrot.slane %v175, 5
      %v553 = vrot.slane %v552, 4
      %v554 = vrot.slane %v176, 5
      %v555 = vsel %vm543, %v553, %v554
      %v556 = vrot.slane %v177, 5
      %v557 = vrot.slane %v556, 4
      %v558 = vrot.slane %v178, 5
      %v559 = vsel %vm543, %v557, %v558
      %v560 = vrot.slane %v179, 5
      %v561 = vrot.slane %v560, 4
      %v562 = vrot.slane %v180, 5
      %v563 = vsel %vm543, %v561, %v562
      %v564 = vrot.slane %v181, 5
      %v565 = vrot.slane %v564, 4
      %v566 = vrot.slane %v182, 5
      %v567 = vsel %vm543, %v565, %v566
      %v568 = vrot.slane %v183, 5
      %v569 = vrot.slane %v568, 4
      %v570 = vrot.slane %v184, 5
      %v571 = vsel %vm543, %v569, %v570
      %v572 = vrot.slane %v185, 5
      %v573 = vrot.slane %v572, 4
      %v574 = vrot.slane %v186, 5
      %v575 = vsel %vm543, %v573, %v574
      %s576 = scalar_lea.vmem %s1, 128
      %v577 = vld [vmem:[%s576] sm:$0xf]
      %v578 = vld [vmem:[%s576 + $0x4] sm:$0xf]
      %v579 = vld [vmem:[%s576 + $0x8] sm:$0xf]
      %v580 = vld [vmem:[%s576 + $0xc] sm:$0xf]
      %v581 = vld [vmem:[%s576 + $0x10] sm:$0xf]
      %v582 = vld [vmem:[%s576 + $0x14] sm:$0xf]
      %v583 = vld [vmem:[%s576 + $0x18] sm:$0xf]
      %v584 = vld [vmem:[%s576 + $0x1c] sm:$0xf]
      %v585 = vld [vmem:[%s576 + $0x20] sm:$0xf]
      %v586 = vld [vmem:[%s576 + $0x24] sm:$0xf]
      %v587 = vld [vmem:[%s576 + $0x28] sm:$0xf]
      %v588 = vld [vmem:[%s576 + $0x2c] sm:$0xf]
      %v589 = vld [vmem:[%s576 + $0x30] sm:$0xf]
      %v590 = vld [vmem:[%s576 + $0x34] sm:$0xf]
      %v591 = vld [vmem:[%s576 + $0x38] sm:$0xf]
      %v592 = vld [vmem:[%s576 + $0x3c] sm:$0xf]
      %v593 = vunpack.c.l.b16 %v547
      %v594 = vunpack.c.l.b16 %v551
      %v595 = vunpack.c.l.b16 %v555
      %v596 = vunpack.c.l.b16 %v559
      %v597 = vunpack.c.l.b16 %v563
      %v598 = vunpack.c.l.b16 %v567
      %v599 = vunpack.c.l.b16 %v571
      %v600 = vunpack.c.l.b16 %v575
      %v601 = vpack.c.b16 %v594, %v593
      %v602 = vpack.c.b16 %v596, %v595
      %v603 = vpack.c.b16 %v598, %v597
      %v604 = vpack.c.b16 %v600, %v599
      %v625 = vunpack.c.l.b16 %v577
      %v626 = vunpack.c.l.b16 %v578
      %v627 = vunpack.c.l.b16 %v579
      %v628 = vunpack.c.l.b16 %v580
      %v629 = vunpack.c.l.b16 %v581
      %v630 = vunpack.c.l.b16 %v582
      %v631 = vunpack.c.l.b16 %v583
      %v632 = vunpack.c.l.b16 %v584
      %v633 = vunpack.c.l.b16 %v585
      %v634 = vunpack.c.l.b16 %v586
      %v635 = vunpack.c.l.b16 %v587
      %v636 = vunpack.c.l.b16 %v588
      %v637 = vunpack.c.l.b16 %v589
      %v638 = vunpack.c.l.b16 %v590
      %v639 = vunpack.c.l.b16 %v591
      %v640 = vunpack.c.l.b16 %v592
      %v641 = vpack.c.b16 %v626, %v625
      %v642 = vpack.c.b16 %v628, %v627
      %v643 = vpack.c.b16 %v630, %v629
      %v644 = vpack.c.b16 %v632, %v631
      %v645 = vpack.c.b16 %v634, %v633
      %v646 = vpack.c.b16 %v636, %v635
      %v647 = vpack.c.b16 %v638, %v637
      %v648 = vpack.c.b16 %v640, %v639
      %657 = vmatpush.bf16.msra.mxu0 %v648
      %658 = vmatpush.bf16.msra.mxu0 %v647
      %659 = vmatpush.bf16.msra.mxu0 %v646
      %660 = vmatpush.bf16.msra.mxu0 %v645
      %661 = vmatpush.bf16.msra.mxu0 %v644
      %662 = vmatpush.bf16.msra.mxu0 %v643
      %663 = vmatpush.bf16.msra.mxu0 %v642
      %664 = vmatpush.bf16.msra.mxu0 %v641
      %665 = vmatmul.bf16.gmra.mxu0 %v601
      %v666 = vpop.f32.mrf.mxu0
      %v667 = vadd.f32 0.0, %v666
      %v668 = vpop.f32.mrf.mxu0
      %v669 = vadd.f32 0.0, %v668
      %670 = vmatmul.bf16.gmra.mxu0 %v602
      %v671 = vpop.f32.mrf.mxu0
      %v672 = vadd.f32 0.0, %v671
      %v673 = vpop.f32.mrf.mxu0
      %v674 = vadd.f32 0.0, %v673
      %675 = vmatmul.bf16.gmra.mxu0 %v603
      %v676 = vpop.f32.mrf.mxu0
      %v677 = vadd.f32 0.0, %v676
      %v678 = vpop.f32.mrf.mxu0
      %v679 = vadd.f32 0.0, %v678
      %680 = vmatmul.bf16.gmra.mxu0 %v604
      %v681 = vpop.f32.mrf.mxu0
      %v682 = vadd.f32 0.0, %v681
      %v683 = vpop.f32.mrf.mxu0
      %v684 = vadd.f32 0.0, %v683
      %685 = vdwg.mxu0
      %v686 = vadd.f32 %v514, %v667
      %v687 = vadd.f32 %v516, %v669
      %v688 = vadd.f32 %v519, %v672
      %v689 = vadd.f32 %v521, %v674
      %v690 = vadd.f32 %v524, %v677
      %v691 = vadd.f32 %v526, %v679
      %v692 = vadd.f32 %v529, %v682
      %v693 = vadd.f32 %v531, %v684
      %s694 = scalar_lea.vmem %s1, 192
      %v695 = vld [vmem:[%s694] sm:$0xf]
      %v696 = vld [vmem:[%s694 + $0x4] sm:$0xf]
      %v697 = vld [vmem:[%s694 + $0x8] sm:$0xf]
      %v698 = vld [vmem:[%s694 + $0xc] sm:$0xf]
      %v699 = vld [vmem:[%s694 + $0x10] sm:$0xf]
      %v700 = vld [vmem:[%s694 + $0x14] sm:$0xf]
      %v701 = vld [vmem:[%s694 + $0x18] sm:$0xf]
      %v702 = vld [vmem:[%s694 + $0x1c] sm:$0xf]
      %v703 = vld [vmem:[%s694 + $0x20] sm:$0xf]
      %v704 = vld [vmem:[%s694 + $0x24] sm:$0xf]
      %v705 = vld [vmem:[%s694 + $0x28] sm:$0xf]
      %v706 = vld [vmem:[%s694 + $0x2c] sm:$0xf]
      %v707 = vld [vmem:[%s694 + $0x30] sm:$0xf]
      %v708 = vld [vmem:[%s694 + $0x34] sm:$0xf]
      %v709 = vld [vmem:[%s694 + $0x38] sm:$0xf]
      %v710 = vld [vmem:[%s694 + $0x3c] sm:$0xf]
      %v712 = vunpack.c.l.b16 %v187
      %v713 = vpack.c.b16 %v442, %v441
      %v714 = vpack.c.b16 %v444, %v443
      %v715 = vpack.c.b16 %v446, %v445
      %v716 = vpack.c.b16 %v712, %v447
      %v737 = vunpack.c.l.b16 %v695
      %v738 = vunpack.c.l.b16 %v696
      %v739 = vunpack.c.l.b16 %v697
      %v740 = vunpack.c.l.b16 %v698
      %v741 = vunpack.c.l.b16 %v699
      %v742 = vunpack.c.l.b16 %v700
      %v743 = vunpack.c.l.b16 %v701
      %v744 = vunpack.c.l.b16 %v702
      %v745 = vunpack.c.l.b16 %v703
      %v746 = vunpack.c.l.b16 %v704
      %v747 = vunpack.c.l.b16 %v705
      %v748 = vunpack.c.l.b16 %v706
      %v749 = vunpack.c.l.b16 %v707
      %v750 = vunpack.c.l.b16 %v708
      %v751 = vunpack.c.l.b16 %v709
      %v752 = vunpack.c.l.b16 %v710
      %v753 = vpack.c.b16 %v738, %v737
      %v754 = vpack.c.b16 %v740, %v739
      %v755 = vpack.c.b16 %v742, %v741
      %v756 = vpack.c.b16 %v744, %v743
      %v757 = vpack.c.b16 %v746, %v745
      %v758 = vpack.c.b16 %v748, %v747
      %v759 = vpack.c.b16 %v750, %v749
      %v760 = vpack.c.b16 %v752, %v751
      %769 = vmatpush.bf16.msra.mxu0 %v760
      %770 = vmatpush.bf16.msra.mxu0 %v759
      %771 = vmatpush.bf16.msra.mxu0 %v758
      %772 = vmatpush.bf16.msra.mxu0 %v757
      %773 = vmatpush.bf16.msra.mxu0 %v756
      %774 = vmatpush.bf16.msra.mxu0 %v755
      %775 = vmatpush.bf16.msra.mxu0 %v754
      %776 = vmatpush.bf16.msra.mxu0 %v753
      %777 = vmatmul.bf16.gmra.mxu0 %v713
      %v778 = vpop.f32.mrf.mxu0
      %v779 = vadd.f32 0.0, %v778
      %v780 = vpop.f32.mrf.mxu0
      %v781 = vadd.f32 0.0, %v780
      %782 = vmatmul.bf16.gmra.mxu0 %v714
      %v783 = vpop.f32.mrf.mxu0
      %v784 = vadd.f32 0.0, %v783
      %v785 = vpop.f32.mrf.mxu0
      %v786 = vadd.f32 0.0, %v785
      %787 = vmatmul.bf16.gmra.mxu0 %v715
      %v788 = vpop.f32.mrf.mxu0
      %v789 = vadd.f32 0.0, %v788
      %v790 = vpop.f32.mrf.mxu0
      %v791 = vadd.f32 0.0, %v790
      %792 = vmatmul.bf16.gmra.mxu0 %v716
      %v793 = vpop.f32.mrf.mxu0
      %v794 = vadd.f32 0.0, %v793
      %v795 = vpop.f32.mrf.mxu0
      %v796 = vadd.f32 0.0, %v795
      %797 = vdwg.mxu0
      %v798 = vadd.f32 %v686, %v779
      %v799 = vadd.f32 %v687, %v781
      %v800 = vadd.f32 %v688, %v784
      %v801 = vadd.f32 %v689, %v786
      %v802 = vadd.f32 %v690, %v789
      %v803 = vadd.f32 %v691, %v791
      %v804 = vadd.f32 %v692, %v794
      %v805 = vadd.f32 %v693, %v796
      %v807 = vshrl.u32 %v187, 16
      %v809 = vrot.slane %v807, 4
      %v810 = vshll.u32 %v187, 16
      %v812 = vrot.slane %v810, 5
      %v813 = vor.u32 %v809, %v812
      %v814 = vrot.slane %v813, 4
      %v816 = vshll.u32 %v188, 16
      %v818 = vrot.slane %v816, 5
      %v819 = vsel %vm209, %v814, %v818
      %s820 = scalar_lea.vmem %s1, 256
      %v821 = vld [vmem:[%s820] sm:$0xf]
      %v822 = vld [vmem:[%s820 + $0x4] sm:$0xf]
      %v823 = vld [vmem:[%s820 + $0x8] sm:$0xf]
      %v824 = vld [vmem:[%s820 + $0xc] sm:$0xf]
      %v825 = vld [vmem:[%s820 + $0x10] sm:$0xf]
      %v826 = vld [vmem:[%s820 + $0x14] sm:$0xf]
      %v827 = vld [vmem:[%s820 + $0x18] sm:$0xf]
      %v828 = vld [vmem:[%s820 + $0x1c] sm:$0xf]
      %v829 = vld [vmem:[%s820 + $0x20] sm:$0xf]
      %v830 = vld [vmem:[%s820 + $0x24] sm:$0xf]
      %v831 = vld [vmem:[%s820 + $0x28] sm:$0xf]
      %v832 = vld [vmem:[%s820 + $0x2c] sm:$0xf]
      %v833 = vld [vmem:[%s820 + $0x30] sm:$0xf]
      %v834 = vld [vmem:[%s820 + $0x34] sm:$0xf]
      %v835 = vld [vmem:[%s820 + $0x38] sm:$0xf]
      %v836 = vld [vmem:[%s820 + $0x3c] sm:$0xf]
      %v837 = vunpack.c.l.b16 %v819
      %v838 = vpack.c.b16 %v341, %v340
      %v839 = vpack.c.b16 %v343, %v342
      %v840 = vpack.c.b16 %v345, %v344
      %v841 = vpack.c.b16 %v837, %v346
      %v862 = vunpack.c.l.b16 %v821
      %v863 = vunpack.c.l.b16 %v822
      %v864 = vunpack.c.l.b16 %v823
      %v865 = vunpack.c.l.b16 %v824
      %v866 = vunpack.c.l.b16 %v825
      %v867 = vunpack.c.l.b16 %v826
      %v868 = vunpack.c.l.b16 %v827
      %v869 = vunpack.c.l.b16 %v828
      %v870 = vunpack.c.l.b16 %v829
      %v871 = vunpack.c.l.b16 %v830
      %v872 = vunpack.c.l.b16 %v831
      %v873 = vunpack.c.l.b16 %v832
      %v874 = vunpack.c.l.b16 %v833
      %v875 = vunpack.c.l.b16 %v834
      %v876 = vunpack.c.l.b16 %v835
      %v877 = vunpack.c.l.b16 %v836
      %v878 = vpack.c.b16 %v863, %v862
      %v879 = vpack.c.b16 %v865, %v864
      %v880 = vpack.c.b16 %v867, %v866
      %v881 = vpack.c.b16 %v869, %v868
      %v882 = vpack.c.b16 %v871, %v870
      %v883 = vpack.c.b16 %v873, %v872
      %v884 = vpack.c.b16 %v875, %v874
      %v885 = vpack.c.b16 %v877, %v876
      %894 = vmatpush.bf16.msra.mxu0 %v885
      %895 = vmatpush.bf16.msra.mxu0 %v884
      %896 = vmatpush.bf16.msra.mxu0 %v883
      %897 = vmatpush.bf16.msra.mxu0 %v882
      %898 = vmatpush.bf16.msra.mxu0 %v881
      %899 = vmatpush.bf16.msra.mxu0 %v880
      %900 = vmatpush.bf16.msra.mxu0 %v879
      %901 = vmatpush.bf16.msra.mxu0 %v878
      %902 = vmatmul.bf16.gmra.mxu0 %v838
      %v903 = vpop.f32.mrf.mxu0
      %v904 = vadd.f32 0.0, %v903
      %v905 = vpop.f32.mrf.mxu0
      %v906 = vadd.f32 0.0, %v905
      %907 = vmatmul.bf16.gmra.mxu0 %v839
      %v908 = vpop.f32.mrf.mxu0
      %v909 = vadd.f32 0.0, %v908
      %v910 = vpop.f32.mrf.mxu0
      %v911 = vadd.f32 0.0, %v910
      %912 = vmatmul.bf16.gmra.mxu0 %v840
      %v913 = vpop.f32.mrf.mxu0
      %v914 = vadd.f32 0.0, %v913
      %v915 = vpop.f32.mrf.mxu0
      %v916 = vadd.f32 0.0, %v915
      %917 = vmatmul.bf16.gmra.mxu0 %v841
      %v918 = vpop.f32.mrf.mxu0
      %v919 = vadd.f32 0.0, %v918
      %v920 = vpop.f32.mrf.mxu0
      %v921 = vadd.f32 0.0, %v920
      %922 = vdwg.mxu0
      %v923 = vadd.f32 %v798, %v904
      %v924 = vadd.f32 %v799, %v906
      %v925 = vadd.f32 %v800, %v909
      %v926 = vadd.f32 %v801, %v911
      %v927 = vadd.f32 %v802, %v914
      %v928 = vadd.f32 %v803, %v916
      %v929 = vadd.f32 %v804, %v919
      %v930 = vadd.f32 %v805, %v921
      %v932 = vrot.slane %v187, 5
      %v933 = vrot.slane %v932, 4
      %v934 = vrot.slane %v188, 5
      %v935 = vsel %vm543, %v933, %v934
      %s936 = scalar_lea.vmem %s1, 320
      %v937 = vld [vmem:[%s936] sm:$0xf]
      %v938 = vld [vmem:[%s936 + $0x4] sm:$0xf]
      %v939 = vld [vmem:[%s936 + $0x8] sm:$0xf]
      %v940 = vld [vmem:[%s936 + $0xc] sm:$0xf]
      %v941 = vld [vmem:[%s936 + $0x10] sm:$0xf]
      %v942 = vld [vmem:[%s936 + $0x14] sm:$0xf]
      %v943 = vld [vmem:[%s936 + $0x18] sm:$0xf]
      %v944 = vld [vmem:[%s936 + $0x1c] sm:$0xf]
      %v945 = vld [vmem:[%s936 + $0x20] sm:$0xf]
      %v946 = vld [vmem:[%s936 + $0x24] sm:$0xf]
      %v947 = vld [vmem:[%s936 + $0x28] sm:$0xf]
      %v948 = vld [vmem:[%s936 + $0x2c] sm:$0xf]
      %v949 = vld [vmem:[%s936 + $0x30] sm:$0xf]
      %v950 = vld [vmem:[%s936 + $0x34] sm:$0xf]
      %v951 = vld [vmem:[%s936 + $0x38] sm:$0xf]
      %v952 = vld [vmem:[%s936 + $0x3c] sm:$0xf]
      %v953 = vunpack.c.l.b16 %v935
      %v954 = vpack.c.b16 %v595, %v594
      %v955 = vpack.c.b16 %v597, %v596
      %v956 = vpack.c.b16 %v599, %v598
      %v957 = vpack.c.b16 %v953, %v600
      %v978 = vunpack.c.l.b16 %v937
      %v979 = vunpack.c.l.b16 %v938
      %v980 = vunpack.c.l.b16 %v939
      %v981 = vunpack.c.l.b16 %v940
      %v982 = vunpack.c.l.b16 %v941
      %v983 = vunpack.c.l.b16 %v942
      %v984 = vunpack.c.l.b16 %v943
      %v985 = vunpack.c.l.b16 %v944
      %v986 = vunpack.c.l.b16 %v945
      %v987 = vunpack.c.l.b16 %v946
      %v988 = vunpack.c.l.b16 %v947
      %v989 = vunpack.c.l.b16 %v948
      %v990 = vunpack.c.l.b16 %v949
      %v991 = vunpack.c.l.b16 %v950
      %v992 = vunpack.c.l.b16 %v951
      %v993 = vunpack.c.l.b16 %v952
      %v994 = vpack.c.b16 %v979, %v978
      %v995 = vpack.c.b16 %v981, %v980
      %v996 = vpack.c.b16 %v983, %v982
      %v997 = vpack.c.b16 %v985, %v984
      %v998 = vpack.c.b16 %v987, %v986
      %v999 = vpack.c.b16 %v989, %v988
      %v1000 = vpack.c.b16 %v991, %v990
      %v1001 = vpack.c.b16 %v993, %v992
      %1010 = vmatpush.bf16.msra.mxu0 %v1001
      %1011 = vmatpush.bf16.msra.mxu0 %v1000
      %1012 = vmatpush.bf16.msra.mxu0 %v999
      %1013 = vmatpush.bf16.msra.mxu0 %v998
      %1014 = vmatpush.bf16.msra.mxu0 %v997
      %1015 = vmatpush.bf16.msra.mxu0 %v996
      %1016 = vmatpush.bf16.msra.mxu0 %v995
      %1017 = vmatpush.bf16.msra.mxu0 %v994
      %1018 = vmatmul.bf16.gmra.mxu0 %v954
      %v1019 = vpop.f32.mrf.mxu0
      %v1020 = vadd.f32 0.0, %v1019
      %v1021 = vpop.f32.mrf.mxu0
      %v1022 = vadd.f32 0.0, %v1021
      %1023 = vmatmul.bf16.gmra.mxu0 %v955
      %v1024 = vpop.f32.mrf.mxu0
      %v1025 = vadd.f32 0.0, %v1024
      %v1026 = vpop.f32.mrf.mxu0
      %v1027 = vadd.f32 0.0, %v1026
      %1028 = vmatmul.bf16.gmra.mxu0 %v956
      %v1029 = vpop.f32.mrf.mxu0
      %v1030 = vadd.f32 0.0, %v1029
      %v1031 = vpop.f32.mrf.mxu0
      %v1032 = vadd.f32 0.0, %v1031
      %1033 = vmatmul.bf16.gmra.mxu0 %v957
      %v1034 = vpop.f32.mrf.mxu0
      %v1035 = vadd.f32 0.0, %v1034
      %v1036 = vpop.f32.mrf.mxu0
      %v1037 = vadd.f32 0.0, %v1036
      %1038 = vdwg.mxu0
      %v1039 = vadd.f32 %v923, %v1020
      %v1040 = vadd.f32 %v924, %v1022
      %v1041 = vadd.f32 %v925, %v1025
      %v1042 = vadd.f32 %v926, %v1027
      %v1043 = vadd.f32 %v927, %v1030
      %v1044 = vadd.f32 %v928, %v1032
      %v1045 = vadd.f32 %v929, %v1035
      %v1046 = vadd.f32 %v930, %v1037
      %s1047 = scalar_lea.vmem %s1, 384
      %v1048 = vld [vmem:[%s1047] sm:$0xf]
      %v1049 = vld [vmem:[%s1047 + $0x4] sm:$0xf]
      %v1050 = vld [vmem:[%s1047 + $0x8] sm:$0xf]
      %v1051 = vld [vmem:[%s1047 + $0xc] sm:$0xf]
      %v1052 = vld [vmem:[%s1047 + $0x10] sm:$0xf]
      %v1053 = vld [vmem:[%s1047 + $0x14] sm:$0xf]
      %v1054 = vld [vmem:[%s1047 + $0x18] sm:$0xf]
      %v1055 = vld [vmem:[%s1047 + $0x1c] sm:$0xf]
      %v1056 = vld [vmem:[%s1047 + $0x20] sm:$0xf]
      %v1057 = vld [vmem:[%s1047 + $0x24] sm:$0xf]
      %v1058 = vld [vmem:[%s1047 + $0x28] sm:$0xf]
      %v1059 = vld [vmem:[%s1047 + $0x2c] sm:$0xf]
      %v1060 = vld [vmem:[%s1047 + $0x30] sm:$0xf]
      %v1061 = vld [vmem:[%s1047 + $0x34] sm:$0xf]
      %v1062 = vld [vmem:[%s1047 + $0x38] sm:$0xf]
      %v1063 = vld [vmem:[%s1047 + $0x3c] sm:$0xf]
      %v1065 = vunpack.c.l.b16 %v189
      %v1066 = vpack.c.b16 %v1065, %v712
      %v1084 = vunpack.c.l.b16 %v1048
      %v1085 = vunpack.c.l.b16 %v1049
      %v1086 = vunpack.c.l.b16 %v1050
      %v1087 = vunpack.c.l.b16 %v1051
      %v1088 = vunpack.c.l.b16 %v1052
      %v1089 = vunpack.c.l.b16 %v1053
      %v1090 = vunpack.c.l.b16 %v1054
      %v1091 = vunpack.c.l.b16 %v1055
      %v1092 = vunpack.c.l.b16 %v1056
      %v1093 = vunpack.c.l.b16 %v1057
      %v1094 = vunpack.c.l.b16 %v1058
      %v1095 = vunpack.c.l.b16 %v1059
      %v1096 = vunpack.c.l.b16 %v1060
      %v1097 = vunpack.c.l.b16 %v1061
      %v1098 = vunpack.c.l.b16 %v1062
      %v1099 = vunpack.c.l.b16 %v1063
      %v1100 = vpack.c.b16 %v1085, %v1084
      %v1101 = vpack.c.b16 %v1087, %v1086
      %v1102 = vpack.c.b16 %v1089, %v1088
      %v1103 = vpack.c.b16 %v1091, %v1090
      %v1104 = vpack.c.b16 %v1093, %v1092
      %v1105 = vpack.c.b16 %v1095, %v1094
      %v1106 = vpack.c.b16 %v1097, %v1096
      %v1107 = vpack.c.b16 %v1099, %v1098
      %1116 = vmatpush.bf16.msra.mxu0 %v1107
      %1117 = vmatpush.bf16.msra.mxu0 %v1106
      %1118 = vmatpush.bf16.msra.mxu0 %v1105
      %1119 = vmatpush.bf16.msra.mxu0 %v1104
      %1120 = vmatpush.bf16.msra.mxu0 %v1103
      %1121 = vmatpush.bf16.msra.mxu0 %v1102
      %1122 = vmatpush.bf16.msra.mxu0 %v1101
      %1123 = vmatpush.bf16.msra.mxu0 %v1100
      %1124 = vmatmul.bf16.gmra.mxu0 %v449
      %v1125 = vpop.f32.mrf.mxu0
      %v1126 = vadd.f32 0.0, %v1125
      %v1127 = vpop.f32.mrf.mxu0
      %v1128 = vadd.f32 0.0, %v1127
      %1129 = vmatmul.bf16.gmra.mxu0 %v450
      %v1130 = vpop.f32.mrf.mxu0
      %v1131 = vadd.f32 0.0, %v1130
      %v1132 = vpop.f32.mrf.mxu0
      %v1133 = vadd.f32 0.0, %v1132
      %1134 = vmatmul.bf16.gmra.mxu0 %v451
      %v1135 = vpop.f32.mrf.mxu0
      %v1136 = vadd.f32 0.0, %v1135
      %v1137 = vpop.f32.mrf.mxu0
      %v1138 = vadd.f32 0.0, %v1137
      %1139 = vmatmul.bf16.gmra.mxu0 %v1066
      %v1140 = vpop.f32.mrf.mxu0
      %v1141 = vadd.f32 0.0, %v1140
      %v1142 = vpop.f32.mrf.mxu0
      %v1143 = vadd.f32 0.0, %v1142
      %1144 = vdwg.mxu0
      %v1145 = vadd.f32 %v1039, %v1126
      %v1146 = vadd.f32 %v1040, %v1128
      %v1147 = vadd.f32 %v1041, %v1131
      %v1148 = vadd.f32 %v1042, %v1133
      %v1149 = vadd.f32 %v1043, %v1136
      %v1150 = vadd.f32 %v1044, %v1138
      %v1151 = vadd.f32 %v1045, %v1141
      %v1152 = vadd.f32 %v1046, %v1143
      %v1154 = vshrl.u32 %v189, 16
      %v1156 = vrot.slane %v1154, 4
      %v1157 = vshll.u32 %v189, 16
      %v1159 = vrot.slane %v1157, 5
      %v1160 = vor.u32 %v1156, %v1159
      %v1161 = vrot.slane %v1160, 4
      %v1163 = vshll.u32 %v190, 16
      %v1165 = vrot.slane %v1163, 5
      %v1166 = vsel %vm209, %v1161, %v1165
      %s1167 = scalar_lea.vmem %s1, 448
      %v1168 = vld [vmem:[%s1167] sm:$0xf]
      %v1169 = vld [vmem:[%s1167 + $0x4] sm:$0xf]
      %v1170 = vld [vmem:[%s1167 + $0x8] sm:$0xf]
      %v1171 = vld [vmem:[%s1167 + $0xc] sm:$0xf]
      %v1172 = vld [vmem:[%s1167 + $0x10] sm:$0xf]
      %v1173 = vld [vmem:[%s1167 + $0x14] sm:$0xf]
      %v1174 = vld [vmem:[%s1167 + $0x18] sm:$0xf]
      %v1175 = vld [vmem:[%s1167 + $0x1c] sm:$0xf]
      %v1176 = vld [vmem:[%s1167 + $0x20] sm:$0xf]
      %v1177 = vld [vmem:[%s1167 + $0x24] sm:$0xf]
      %v1178 = vld [vmem:[%s1167 + $0x28] sm:$0xf]
      %v1179 = vld [vmem:[%s1167 + $0x2c] sm:$0xf]
      %v1180 = vld [vmem:[%s1167 + $0x30] sm:$0xf]
      %v1181 = vld [vmem:[%s1167 + $0x34] sm:$0xf]
      %v1182 = vld [vmem:[%s1167 + $0x38] sm:$0xf]
      %v1183 = vld [vmem:[%s1167 + $0x3c] sm:$0xf]
      %v1184 = vunpack.c.l.b16 %v1166
      %v1185 = vpack.c.b16 %v1184, %v837
      %v1203 = vunpack.c.l.b16 %v1168
      %v1204 = vunpack.c.l.b16 %v1169
      %v1205 = vunpack.c.l.b16 %v1170
      %v1206 = vunpack.c.l.b16 %v1171
      %v1207 = vunpack.c.l.b16 %v1172
      %v1208 = vunpack.c.l.b16 %v1173
      %v1209 = vunpack.c.l.b16 %v1174
      %v1210 = vunpack.c.l.b16 %v1175
      %v1211 = vunpack.c.l.b16 %v1176
      %v1212 = vunpack.c.l.b16 %v1177
      %v1213 = vunpack.c.l.b16 %v1178
      %v1214 = vunpack.c.l.b16 %v1179
      %v1215 = vunpack.c.l.b16 %v1180
      %v1216 = vunpack.c.l.b16 %v1181
      %v1217 = vunpack.c.l.b16 %v1182
      %v1218 = vunpack.c.l.b16 %v1183
      %v1219 = vpack.c.b16 %v1204, %v1203
      %v1220 = vpack.c.b16 %v1206, %v1205
      %v1221 = vpack.c.b16 %v1208, %v1207
      %v1222 = vpack.c.b16 %v1210, %v1209
      %v1223 = vpack.c.b16 %v1212, %v1211
      %v1224 = vpack.c.b16 %v1214, %v1213
      %v1225 = vpack.c.b16 %v1216, %v1215
      %v1226 = vpack.c.b16 %v1218, %v1217
      %1235 = vmatpush.bf16.msra.mxu0 %v1226
      %1236 = vmatpush.bf16.msra.mxu0 %v1225
      %1237 = vmatpush.bf16.msra.mxu0 %v1224
      %1238 = vmatpush.bf16.msra.mxu0 %v1223
      %1239 = vmatpush.bf16.msra.mxu0 %v1222
      %1240 = vmatpush.bf16.msra.mxu0 %v1221
      %1241 = vmatpush.bf16.msra.mxu0 %v1220
      %1242 = vmatpush.bf16.msra.mxu0 %v1219
      %1243 = vmatmul.bf16.gmra.mxu0 %v348
      %v1244 = vpop.f32.mrf.mxu0
      %v1245 = vadd.f32 0.0, %v1244
      %v1246 = vpop.f32.mrf.mxu0
      %v1247 = vadd.f32 0.0, %v1246
      %1248 = vmatmul.bf16.gmra.mxu0 %v349
      %v1249 = vpop.f32.mrf.mxu0
      %v1250 = vadd.f32 0.0, %v1249
      %v1251 = vpop.f32.mrf.mxu0
      %v1252 = vadd.f32 0.0, %v1251
      %1253 = vmatmul.bf16.gmra.mxu0 %v350
      %v1254 = vpop.f32.mrf.mxu0
      %v1255 = vadd.f32 0.0, %v1254
      %v1256 = vpop.f32.mrf.mxu0
      %v1257 = vadd.f32 0.0, %v1256
      %1258 = vmatmul.bf16.gmra.mxu0 %v1185
      %v1259 = vpop.f32.mrf.mxu0
      %v1260 = vadd.f32 0.0, %v1259
      %v1261 = vpop.f32.mrf.mxu0
      %v1262 = vadd.f32 0.0, %v1261
      %1263 = vdwg.mxu0
      %v1264 = vadd.f32 %v1145, %v1245
      %v1265 = vadd.f32 %v1146, %v1247
      %v1266 = vadd.f32 %v1147, %v1250
      %v1267 = vadd.f32 %v1148, %v1252
      %v1268 = vadd.f32 %v1149, %v1255
      %v1269 = vadd.f32 %v1150, %v1257
      %v1270 = vadd.f32 %v1151, %v1260
      %v1271 = vadd.f32 %v1152, %v1262
      %v1273 = vrot.slane %v189, 5
      %v1274 = vrot.slane %v1273, 4
      %v1275 = vrot.slane %v190, 5
      %v1276 = vsel %vm543, %v1274, %v1275
      %s1277 = scalar_lea.vmem %s1, 512
      %v1278 = vld [vmem:[%s1277] sm:$0xf]
      %v1279 = vld [vmem:[%s1277 + $0x4] sm:$0xf]
      %v1280 = vld [vmem:[%s1277 + $0x8] sm:$0xf]
      %v1281 = vld [vmem:[%s1277 + $0xc] sm:$0xf]
      %v1282 = vld [vmem:[%s1277 + $0x10] sm:$0xf]
      %v1283 = vld [vmem:[%s1277 + $0x14] sm:$0xf]
      %v1284 = vld [vmem:[%s1277 + $0x18] sm:$0xf]
      %v1285 = vld [vmem:[%s1277 + $0x1c] sm:$0xf]
      %v1286 = vld [vmem:[%s1277 + $0x20] sm:$0xf]
      %v1287 = vld [vmem:[%s1277 + $0x24] sm:$0xf]
      %v1288 = vld [vmem:[%s1277 + $0x28] sm:$0xf]
      %v1289 = vld [vmem:[%s1277 + $0x2c] sm:$0xf]
      %v1290 = vld [vmem:[%s1277 + $0x30] sm:$0xf]
      %v1291 = vld [vmem:[%s1277 + $0x34] sm:$0xf]
      %v1292 = vld [vmem:[%s1277 + $0x38] sm:$0xf]
      %v1293 = vld [vmem:[%s1277 + $0x3c] sm:$0xf]
      %v1294 = vunpack.c.l.b16 %v1276
      %v1295 = vpack.c.b16 %v1294, %v953
      %v1313 = vunpack.c.l.b16 %v1278
      %v1314 = vunpack.c.l.b16 %v1279
      %v1315 = vunpack.c.l.b16 %v1280
      %v1316 = vunpack.c.l.b16 %v1281
      %v1317 = vunpack.c.l.b16 %v1282
      %v1318 = vunpack.c.l.b16 %v1283
      %v1319 = vunpack.c.l.b16 %v1284
      %v1320 = vunpack.c.l.b16 %v1285
      %v1321 = vunpack.c.l.b16 %v1286
      %v1322 = vunpack.c.l.b16 %v1287
      %v1323 = vunpack.c.l.b16 %v1288
      %v1324 = vunpack.c.l.b16 %v1289
      %v1325 = vunpack.c.l.b16 %v1290
      %v1326 = vunpack.c.l.b16 %v1291
      %v1327 = vunpack.c.l.b16 %v1292
      %v1328 = vunpack.c.l.b16 %v1293
      %v1329 = vpack.c.b16 %v1314, %v1313
      %v1330 = vpack.c.b16 %v1316, %v1315
      %v1331 = vpack.c.b16 %v1318, %v1317
      %v1332 = vpack.c.b16 %v1320, %v1319
      %v1333 = vpack.c.b16 %v1322, %v1321
      %v1334 = vpack.c.b16 %v1324, %v1323
      %v1335 = vpack.c.b16 %v1326, %v1325
      %v1336 = vpack.c.b16 %v1328, %v1327
      %1345 = vmatpush.bf16.msra.mxu0 %v1336
      %1346 = vmatpush.bf16.msra.mxu0 %v1335
      %1347 = vmatpush.bf16.msra.mxu0 %v1334
      %1348 = vmatpush.bf16.msra.mxu0 %v1333
      %1349 = vmatpush.bf16.msra.mxu0 %v1332
      %1350 = vmatpush.bf16.msra.mxu0 %v1331
      %1351 = vmatpush.bf16.msra.mxu0 %v1330
      %1352 = vmatpush.bf16.msra.mxu0 %v1329
      %1353 = vmatmul.bf16.gmra.mxu0 %v602
      %v1354 = vpop.f32.mrf.mxu0
      %v1355 = vadd.f32 0.0, %v1354
      %v1356 = vpop.f32.mrf.mxu0
      %v1357 = vadd.f32 0.0, %v1356
      %1358 = vmatmul.bf16.gmra.mxu0 %v603
      %v1359 = vpop.f32.mrf.mxu0
      %v1360 = vadd.f32 0.0, %v1359
      %v1361 = vpop.f32.mrf.mxu0
      %v1362 = vadd.f32 0.0, %v1361
      %1363 = vmatmul.bf16.gmra.mxu0 %v604
      %v1364 = vpop.f32.mrf.mxu0
      %v1365 = vadd.f32 0.0, %v1364
      %v1366 = vpop.f32.mrf.mxu0
      %v1367 = vadd.f32 0.0, %v1366
      %1368 = vmatmul.bf16.gmra.mxu0 %v1295
      %v1369 = vpop.f32.mrf.mxu0
      %v1370 = vadd.f32 0.0, %v1369
      %v1371 = vpop.f32.mrf.mxu0
      %v1372 = vadd.f32 0.0, %v1371
      %1373 = vdwg.mxu0
      %v1374 = vadd.f32 %v1264, %v1355
      %v1375 = vadd.f32 %v1265, %v1357
      %v1376 = vadd.f32 %v1266, %v1360
      %v1377 = vadd.f32 %v1267, %v1362
      %v1378 = vadd.f32 %v1268, %v1365
      %v1379 = vadd.f32 %v1269, %v1367
      %v1380 = vadd.f32 %v1270, %v1370
      %v1381 = vadd.f32 %v1271, %v1372
      %v1382 = vld [vmem:[%s2] sm:$0x1]
      %v1384 = vperm.slane %v1382, 0
      %v1386 = vadd.f32 %v1374, %v1384
      %v1387 = vadd.f32 %v1375, %v1384
      %v1388 = vadd.f32 %v1376, %v1384
      %v1389 = vadd.f32 %v1377, %v1384
      %v1390 = vadd.f32 %v1378, %v1384
      %v1391 = vadd.f32 %v1379, %v1384
      %v1392 = vadd.f32 %v1380, %v1384
      %v1393 = vadd.f32 %v1381, %v1384
      %v1394 = vmax.f32 %v1386, 0.0
      %v1395 = vmax.f32 %v1387, 0.0
      %v1396 = vmax.f32 %v1388, 0.0
      %v1397 = vmax.f32 %v1389, 0.0
      %v1398 = vmax.f32 %v1390, 0.0
      %v1399 = vmax.f32 %v1391, 0.0
      %v1400 = vmax.f32 %v1392, 0.0
      %v1401 = vmax.f32 %v1393, 0.0
      %v1402 = vpack.c.bf16 %v1394, %v1394
      %v1403 = vpack.c.bf16 %v1395, %v1395
      %v1404 = vpack.c.bf16 %v1396, %v1396
      %v1405 = vpack.c.bf16 %v1397, %v1397
      %v1406 = vpack.c.bf16 %v1398, %v1398
      %v1407 = vpack.c.bf16 %v1399, %v1399
      %v1408 = vpack.c.bf16 %v1400, %v1400
      %v1409 = vpack.c.bf16 %v1401, %v1401
      %1410 = vst [vmem:[%s170] sm:$0xf] %v1402
      %1411 = vst [vmem:[%s170 + $0x4] sm:$0xf] %v1403
      %1412 = vst [vmem:[%s170 + $0x8] sm:$0xf] %v1404
      %1413 = vst [vmem:[%s170 + $0xc] sm:$0xf] %v1405
      %1414 = vst [vmem:[%s170 + $0x10] sm:$0xf] %v1406
      %1415 = vst [vmem:[%s170 + $0x14] sm:$0xf] %v1407
      %1416 = vst [vmem:[%s170 + $0x18] sm:$0xf] %v1408
      %1417 = vst [vmem:[%s170 + $0x1c] sm:$0xf] %v1409
      %p1418 = scmp.lt.s32.totalorder %s14, 3
      %s1419 = scalar_select %p1418, %s14, 3
      %s1420 = smul.addr %s1419, 8
      %s1421 = smul.addr %s1420, 4
      %s1422 = scalar_lea.vmem %s3, %s1421
      // Predicated region
      $region33: #{resnet_encoder_forward.7} parent=31 // pred_check
        %p1423 = pneg %p100
      $region34: #{resnet_encoder_forward.7} parent=31 // pred_check_branch
        %1425 = sbr.rel (%p1423) target = $region36
      $region35: #{resnet_encoder_forward.7} parent=31 // pred_region
        _
      $region36: #{resnet_encoder_forward.7} parent=31 // pred_fallthru
        _
    $region32: #{resnet_encoder_forward.7} parent=5 // pred_fallthru
      _
    %p1426 = scmp.le.s32.totalorder 2, %s9
    // Predicated region
    $region37: #{resnet_encoder_forward.7} parent=5 // pred_check
      %p1427 = pneg %p1426
    $region38: #{resnet_encoder_forward.7} parent=5 // pred_check_branch
      %1429 = sbr.rel (%p1427) target = $region40
    $region39: #{resnet_encoder_forward.7} parent=5 // pred_region
      %s1430 = ssub.s32 %s9, 2
      // Predicated region
      $region41: #{resnet_encoder_forward.7} parent=39 // pred_check
        %p1431 = pneg %p106
      $region42: #{resnet_encoder_forward.7} parent=39 // pred_check_branch
        %1433 = sbr.rel (%p1431) target = $region44
      $region43: #{resnet_encoder_forward.7} parent=39 // pred_region
        %p1434 = scmp.lt.s32.totalorder %s15, 3
        %s1435 = scalar_select %p1434, %s15, 3
        %s1436 = smul.addr %s1435, 8
        %s1437 = smul.addr %s1436, 4
        %s1438 = scalar_lea.vmem %s3, %s1437
      $region44: #{resnet_encoder_forward.7} parent=39 // pred_fallthru
        _
    $region40: #{resnet_encoder_forward.7} parent=5 // pred_fallthru
      _
  $region6: #{resnet_encoder_forward.7} parent=0 // loop_footer
    %s13 = sadd.s32 1, %s9
  $region7: #{resnet_encoder_forward.7} parent=0 // loop_footer_branch
    %8 = sbr.rel target = $region3
  $region8: #{resnet_encoder_forward.7} parent=0 // loop_exit
    _

</llo_original>
